<compile_context>
chip_gen: v7x
topology: tpu7x:2x2x1
jax: 0.10.0
libtpu: 0.0.40
codegen_flags: <defaults>
</compile_context>

<pallas_src>
import jax
import jax.numpy as jnp
from jax.experimental import pallas as pl
from jax.experimental.pallas import tpu as pltpu

EMBEDDING_DIM = 1024
VOCAB_SIZE = 8194
C1 = 200                     # first transposed-conv out channels
C2 = 100                     # second transposed-conv out channels
KS = 2                       # kernel_size == stride for both convs
NFUSE = KS * KS * C2         # 400 fused output channels (tap-major: 2k+j)
NFUSE_PAD = 512              # padded to a multiple of 128 / 256 (lane + MXU dense)


def _round_up(x, m):
    return ((x + m - 1) // m) * m


# --------------------------------------------------------------------------
# Pallas kernel: fused (embedding-row tile) @ (fused conv weights) + bias
# --------------------------------------------------------------------------
def _fused_upsample_kernel(e_ref, wf_ref, bf_ref, o_ref):
    # e_ref:  (tn, 1024)   token embedding rows (bf16 or f32)
    # wf_ref: (1024, 512)  fused W1*W2 weights, zero-padded 400 -> 512
    # bf_ref: (1, 512)     fused bias (f32)
    # o_ref:  (tn, 512)    lane-dense f32 output
    acc = jnp.dot(e_ref[...], wf_ref[...], preferred_element_type=jnp.float32)
    o_ref[...] = (acc + bf_ref[...]).astype(o_ref.dtype)


def _fused_upsample(e, wf, bf, *, tn=256):
    """e: (N, 1024). Returns (N, NFUSE_PAD) float32."""
    n, d = e.shape
    nf = wf.shape[1]
    tn = min(tn, _round_up(n, 8))          # small inputs: single tile
    n_pad = _round_up(n, tn)
    if n_pad != n:
        e = jnp.pad(e, ((0, n_pad - n), (0, 0)))

    out = pl.pallas_call(
        _fused_upsample_kernel,
        out_shape=jax.ShapeDtypeStruct((n_pad, nf), jnp.float32),
        grid=(n_pad // tn,),
        in_specs=[
            pl.BlockSpec((tn, d), lambda i: (i, 0)),    # token tile
            pl.BlockSpec((d, nf), lambda i: (0, 0)),    # fused weights (resident)
            pl.BlockSpec((1, nf), lambda i: (0, 0)),    # fused bias
        ],
        out_specs=pl.BlockSpec((tn, nf), lambda i: (i, 0)),
        compiler_params=pltpu.CompilerParams(
            dimension_semantics=("parallel",),          # megacore-shardable
            vmem_limit_bytes=32 * 1024 * 1024,          # headroom for tn sweeps
        ),
    )(e, wf, bf)
    return out[:n]


# --------------------------------------------------------------------------
# Plain-JAX glue: fused weight packing, gather, time de-interleave
# --------------------------------------------------------------------------
def _pack_fused_weights(w1, b1, w2, b2, compute_dtype):
    # w1: (1024, 200, 2), w2: (200, 100, 2)  [ConvTranspose1d weight layout]
    # Fused column block for tap = 2k + j is  W1[:,:,k] @ W2[:,:,j].
    wf = jnp.einsum("dck,cmj->dkjm", w1, w2).reshape(EMBEDDING_DIM, NFUSE)
    # Fused bias for tap = 2k + j is  b1 @ W2[:,:,j] + b2  (independent of k).
    b1w2 = jnp.einsum("c,cmj->jm", b1, w2) + b2[None, :]            # (2, 100)
    bf = jnp.broadcast_to(b1w2[None, :, :], (KS, KS, C2)).reshape(NFUSE)
    pad = NFUSE_PAD - NFUSE
    wf = jnp.pad(wf, ((0, 0), (0, pad))).astype(compute_dtype)
    bf = jnp.pad(bf, (0, pad)).reshape(1, NFUSE_PAD).astype(jnp.float32)
    return wf, bf


def upsampler_forward(params, x, z=None, *, tn=256, compute_dtype=jnp.bfloat16):
    """x: (B, T) int32 ids -> (B, 100, 4*T) float32 (NCL). z unused."""
    emb, w1, b1, w2, b2 = params
    B, T = x.shape
    ids = x.reshape(-1).astype(jnp.int32)

    # Embedding gather in plain JAX (perf-review option (b)): avoids the
    # per-token pallas_call grid overhead and the extra HBM round trip.
    # TODO(synk): for full fusion, gather rows with per-tile manual DMAs
    # (memory_space=pl.ANY + pltpu.make_async_copy) inside the matmul kernel.
    e = jnp.take(emb.astype(compute_dtype), ids, axis=0)            # (B*T, 1024)

    wf, bf = _pack_fused_weights(w1, b1, w2, b2, compute_dtype)
    y = _fused_upsample(e, wf, bf, tn=tn)                           # (B*T, 512)
    # De-interleave: column order is (k, j, channel), so flattening over
    # (t, k, j) gives output time index 4t + 2k + j.
    y = y[:, :NFUSE].reshape(B, KS * KS * T, C2)                    # (B, 4T, 100)
    return jnp.transpose(y, (0, 2, 1))                              # (B, 100, 4T)


# --------------------------------------------------------------------------
# Params + pure-JAX two-stage reference (for a numerics sanity check)
# --------------------------------------------------------------------------
def init_params(key):
    # TODO(synk): PyTorch re-creates these layers with fresh random weights on
    # every forward call; here we initialize once, deterministically.
    k0, k1, k2, k3, k4 = jax.random.split(key, 5)
    emb = jax.random.normal(k0, (VOCAB_SIZE, EMBEDDING_DIM), jnp.float32)
    bound1 = 1.0 / (EMBEDDING_DIM * KS) ** 0.5
    w1 = jax.random.uniform(k1, (EMBEDDING_DIM, C1, KS), jnp.float32,
                            -bound1, bound1)
    b1 = jax.random.uniform(k2, (C1,), jnp.float32, -bound1, bound1)
    bound2 = 1.0 / (C1 * KS) ** 0.5
    w2 = jax.random.uniform(k3, (C1, C2, KS), jnp.float32, -bound2, bound2)
    b2 = jax.random.uniform(k4, (C2,), jnp.float32, -bound2, bound2)
    return emb, w1, b1, w2, b2


def _reference_forward(params, x):
    emb, w1, b1, w2, b2 = params
    B, T = x.shape
    e = jnp.take(emb, x.reshape(-1).astype(jnp.int32), axis=0)
    e = e.reshape(B, T, EMBEDDING_DIM)
    y1 = jnp.einsum("btd,dck->btkc", e, w1) + b1                    # (B,T,2,200)
    y1 = y1.reshape(B, KS * T, C1)                                  # time 2t+k
    y2 = jnp.einsum("bsc,cmj->bsjm", y1, w2) + b2                   # (B,2T,2,100)
    y2 = y2.reshape(B, KS * KS * T, C2)                             # time 4t+2k+j
    return jnp.transpose(y2, (0, 2, 1))


if __name__ == "__main__":
    key = jax.random.PRNGKey(0)
    pkey, xkey = jax.random.split(key)
    params = init_params(pkey)

    B, T = 2, 8
    x = jax.random.randint(xkey, (B, T), 0, VOCAB_SIZE, dtype=jnp.int32)
    z = jnp.zeros((1,), jnp.float32)   # unused; mirrors the PyTorch signature

    # Default (bf16 matmul inputs, f32 accumulation).
    out = jax.block_until_ready(upsampler_forward(params, x, z))
    assert out.shape == (B, C2, 4 * T), out.shape
    assert out.dtype == jnp.float32

    # Numerics check on the f32 compute path vs a two-stage pure-JAX reference
    # (fused matmul only changes f32 summation order).
    out_f32 = jax.block_until_ready(
        upsampler_forward(params, x, z, compute_dtype=jnp.float32))
    ref = jax.block_until_ready(_reference_forward(params, x))
    assert jnp.allclose(out_f32, ref, rtol=1e-4, atol=1e-4), float(
        jnp.max(jnp.abs(out_f32 - ref)))

    print("KERNEL_OK")
</pallas_src>

<mosaic_0001>
module attributes {stable_mosaic.version = 11 : i64} {
  func.func @_fused_upsample_kernel(%arg0: i32, %arg1: memref<16x1024xbf16, #tpu.memory_space<vmem>>, %arg2: memref<1024x512xbf16, #tpu.memory_space<vmem>>, %arg3: memref<1x512xf32, #tpu.memory_space<vmem>>, %arg4: memref<16x512xf32, #tpu.memory_space<vmem>>) attributes {dimension_semantics = [#tpu.dimension_semantics<parallel>], iteration_bounds = array<i64: 1>, scalar_prefetch = 0 : i64, scratch_operands = 0 : i64, tpu.core_type = #tpu.core_type<tc>, window_params = [{transform_indices = @transform_0, window_bounds = array<i64: 16, 1024>}, {pipeline_mode = #tpu.pipeline_mode<synchronous>, transform_indices = @transform_1, window_bounds = array<i64: 1024, 512>}, {pipeline_mode = #tpu.pipeline_mode<synchronous>, transform_indices = @transform_2, window_bounds = array<i64: 1, 512>}, {transform_indices = @transform_3, window_bounds = array<i64: 16, 512>}]} {
    %c0 = arith.constant 0 : index
    %c0_0 = arith.constant 0 : index
    %0 = vector.load %arg1[%c0, %c0_0] : memref<16x1024xbf16, #tpu.memory_space<vmem>>, vector<16x1024xbf16>
    %c0_1 = arith.constant 0 : index
    %c0_2 = arith.constant 0 : index
    %1 = vector.load %arg2[%c0_1, %c0_2] : memref<1024x512xbf16, #tpu.memory_space<vmem>>, vector<1024x512xbf16>
    %cst = arith.constant dense<0.000000e+00> : vector<16x512xf32>
    %2 = tpu.matmul %0, %1, %cst {dimension_numbers = #tpu.dot_dimension_numbers<[1], [0], [0], [1], [0, 0, 1, 1], [], []>} : vector<16x1024xbf16>, vector<1024x512xbf16>, vector<16x512xf32> -> vector<16x512xf32>
    %c0_3 = arith.constant 0 : index
    %c0_4 = arith.constant 0 : index
    %3 = vector.load %arg3[%c0_3, %c0_4] : memref<1x512xf32, #tpu.memory_space<vmem>>, vector<1x512xf32>
    %4 = vector.broadcast %3 : vector<1x512xf32> to vector<16x512xf32>
    %5 = arith.addf %2, %4 : vector<16x512xf32>
    %c0_5 = arith.constant 0 : index
    %c0_6 = arith.constant 0 : index
    %6 = vector.load %arg4[%c0_5, %c0_6] : memref<16x512xf32, #tpu.memory_space<vmem>>, vector<16x512xf32>
    tpu.vector_store %arg4[%c0_5, %c0_6], %5 {strides = array<i32>} : memref<16x512xf32, #tpu.memory_space<vmem>>, vector<16x512xf32>,
    return
  }
  func.func @transform_0(%arg0: i32) -> (i32, i32) {
    %c0_i32 = arith.constant 0 : i32
    %c0_i32_0 = arith.constant 0 : i32
    return %arg0, %c0_i32 : i32, i32
  }
  func.func @transform_1(%arg0: i32) -> (i32, i32) {
    %c0_i32 = arith.constant 0 : i32
    %c0_i32_0 = arith.constant 0 : i32
    %c0_i32_1 = arith.constant 0 : i32
    return %c0_i32, %c0_i32_0 : i32, i32
  }
  func.func @transform_2(%arg0: i32) -> (i32, i32) {
    %c0_i32 = arith.constant 0 : i32
    %c0_i32_0 = arith.constant 0 : i32
    %c0_i32_1 = arith.constant 0 : i32
    return %c0_i32, %c0_i32_0 : i32, i32
  }
  func.func @transform_3(%arg0: i32) -> (i32, i32) {
    %c0_i32 = arith.constant 0 : i32
    %c0_i32_0 = arith.constant 0 : i32
    return %arg0, %c0_i32 : i32, i32
  }
}

</mosaic_0001>

<llo_original>
// kernel: tpu_custom_call.1
$region0: #{tpu_custom_call.1}
  #allocation0 [shape = 'u32[]', space=smem, size = 0x4, offset = 0x4, fixed_abs, tag = 'smem constant byte address 0x4 - core index']
  #allocation1 [shape = 'u32[144,128]{1,0:T(1,128)}', space=vmem, size = 0x12000, scoped, tag = 'internal scratch']
  %s0 = inlined_call_operand.hbm [shape: bf16[16,1024], index: 0, kind: input, shape index: {}]
  %s1 = inlined_call_operand.hbm [shape: bf16[1024,512], index: 1, kind: input, shape index: {}]
  %s2 = inlined_call_operand.vmem [shape: f32[1,512], index: 2, kind: input, shape index: {}]
  %s3 = inlined_call_operand.hbm [shape: f32[16,512], index: 3, kind: output, shape index: {}]
  %s4 = sld [smem:[#allocation0]]
  $region30: #{tpu_custom_call.1} parent=0
    _
  %s6 = ssub.s32 1, %s4
  %s7 = scalar_select 0, %s6, %s4
  $region1: #{tpu_custom_call.1} parent=0
    #allocation2 [shape = 'u8[32768]{0}', space=vmem, size = 0x8000, scoped, tag = 'input window, operand 0, single buffered']
    #allocation3 [shape = 's32[1]{0}', space=sflag, size = 0x4, scoped, tag = 'scoped memory for tpu_custom_call.1']
    #allocation4 [shape = 's32[1]{0}', space=sflag, size = 0x4, scoped, tag = 'scoped memory for tpu_custom_call.1']
    #allocation5 [shape = 'u8[1048576]{0}', space=vmem, size = 0x100000, scoped, tag = 'input window, operand 1, single buffered']
    #allocation6 [shape = 's32[1]{0}', space=sflag, size = 0x4, scoped, tag = 'scoped memory for tpu_custom_call.1']
    #allocation7 [shape = 'u8[32768]{0}', space=vmem, size = 0x8000, scoped, tag = 'output window, operand 0, single buffered']
    %8 = vsyncpa [#allocation3], 0
    %9 = vsyncpa [#allocation6], 0
    %10 = vsyncpa [#allocation4], 0
    // Predicated region
    $region2: #{tpu_custom_call.1} parent=1 // pred_check
      _
    $region3: #{tpu_custom_call.1} parent=1 // pred_check_branch
      %12 = sbr.rel (0) target = $region5
    $region4: #{tpu_custom_call.1} parent=1 // pred_region
      %s14 = ssub.s32 1024, 1024
      %15 = vsyncadd [#allocation3], %s14
      %s16 = sshll.u32 [#allocation2], 4
      %s17 = int_to_ptr.vmem [resolvable:$true] %s16
      %22 = dma.hbm_to_vmem [thread:$0]  %s0, 1024, %s17, [#allocation3], 512, 512, 32
    $region5: #{tpu_custom_call.1} parent=1 // pred_fallthru
      _
    // Predicated region
    $region6: #{tpu_custom_call.1} parent=1 // pred_check
      _
    $region7: #{tpu_custom_call.1} parent=1 // pred_check_branch
      %24 = sbr.rel (0) target = $region9
    $region8: #{tpu_custom_call.1} parent=1 // pred_region
      %s26 = ssub.s32 32768, 32768
      %27 = vsyncadd [#allocation6], %s26
      %s28 = sshll.u32 [#allocation5], 4
      %s29 = int_to_ptr.vmem [resolvable:$true] %s28
      %34 = dma.hbm_to_vmem [thread:$0]  %s1, 32768, %s29, [#allocation6], 256, 256, 16
    $region9: #{tpu_custom_call.1} parent=1 // pred_fallthru
      _
    // Predicated region
    $region10: #{tpu_custom_call.1} parent=1 // pred_check
      _
    $region11: #{tpu_custom_call.1} parent=1 // pred_check_branch
      %36 = sbr.rel (0) target = $region13
    $region12: #{tpu_custom_call.1} parent=1 // pred_region
      _
    $region13: #{tpu_custom_call.1} parent=1 // pred_fallthru
      _
    // Predicated region
    $region14: #{tpu_custom_call.1} parent=1 // pred_check
      _
    $region15: #{tpu_custom_call.1} parent=1 // pred_check_branch
      %38 = sbr.rel (0) target = $region17
    $region16: #{tpu_custom_call.1} parent=1 // pred_region
      %39 = dma.done [#allocation3], 1024
    $region17: #{tpu_custom_call.1} parent=1 // pred_fallthru
      _
    // Predicated region
    $region18: #{tpu_custom_call.1} parent=1 // pred_check
      _
    $region19: #{tpu_custom_call.1} parent=1 // pred_check_branch
      %41 = sbr.rel (0) target = $region21
    $region20: #{tpu_custom_call.1} parent=1 // pred_region
      %42 = dma.done [#allocation6], 32768
    $region21: #{tpu_custom_call.1} parent=1 // pred_fallthru
      _
    %v43 = vld [vmem:[#allocation2] sm:$0xff]
    %v44 = vld [vmem:[#allocation2 + $0x8] sm:$0xff]
    %v45 = vld [vmem:[#allocation2 + $0x10] sm:$0xff]
    %v46 = vld [vmem:[#allocation2 + $0x18] sm:$0xff]
    %v47 = vld [vmem:[#allocation2 + $0x20] sm:$0xff]
    %v48 = vld [vmem:[#allocation2 + $0x28] sm:$0xff]
    %v49 = vld [vmem:[#allocation2 + $0x30] sm:$0xff]
    %v50 = vld [vmem:[#allocation2 + $0x38] sm:$0xff]
    %v51 = vld [vmem:[#allocation5] sm:$0xff]
    %v52 = vld [vmem:[#allocation5 + $0x8] sm:$0xff]
    %v53 = vld [vmem:[#allocation5 + $0x10] sm:$0xff]
    %v54 = vld [vmem:[#allocation5 + $0x18] sm:$0xff]
    %v55 = vld [vmem:[#allocation5 + $0x20] sm:$0xff]
    %v56 = vld [vmem:[#allocation5 + $0x28] sm:$0xff]
    %v57 = vld [vmem:[#allocation5 + $0x30] sm:$0xff]
    %v58 = vld [vmem:[#allocation5 + $0x38] sm:$0xff]
    %v59 = vld [vmem:[#allocation5 + $0x40] sm:$0xff]
    %v60 = vld [vmem:[#allocation5 + $0x48] sm:$0xff]
    %v61 = vld [vmem:[#allocation5 + $0x50] sm:$0xff]
    %v62 = vld [vmem:[#allocation5 + $0x58] sm:$0xff]
    %v63 = vld [vmem:[#allocation5 + $0x60] sm:$0xff]
    %v64 = vld [vmem:[#allocation5 + $0x68] sm:$0xff]
    %v65 = vld [vmem:[#allocation5 + $0x70] sm:$0xff]
    %v66 = vld [vmem:[#allocation5 + $0x78] sm:$0xff]
    %v67 = vld [vmem:[#allocation5 + $0x80] sm:$0xff]
    %v68 = vld [vmem:[#allocation5 + $0x88] sm:$0xff]
    %v69 = vld [vmem:[#allocation5 + $0x90] sm:$0xff]
    %v70 = vld [vmem:[#allocation5 + $0x98] sm:$0xff]
    %v71 = vld [vmem:[#allocation5 + $0xa0] sm:$0xff]
    %v72 = vld [vmem:[#allocation5 + $0xa8] sm:$0xff]
    %v73 = vld [vmem:[#allocation5 + $0xb0] sm:$0xff]
    %v74 = vld [vmem:[#allocation5 + $0xb8] sm:$0xff]
    %v75 = vld [vmem:[#allocation5 + $0xc0] sm:$0xff]
    %v76 = vld [vmem:[#allocation5 + $0xc8] sm:$0xff]
    %v77 = vld [vmem:[#allocation5 + $0xd0] sm:$0xff]
    %v78 = vld [vmem:[#allocation5 + $0xd8] sm:$0xff]
    %v79 = vld [vmem:[#allocation5 + $0xe0] sm:$0xff]
    %v80 = vld [vmem:[#allocation5 + $0xe8] sm:$0xff]
    %v81 = vld [vmem:[#allocation5 + $0xf0] sm:$0xff]
    %v82 = vld [vmem:[#allocation5 + $0xf8] sm:$0xff]
    %v83 = vld [vmem:[#allocation5 + $0x100] sm:$0xff]
    %v84 = vld [vmem:[#allocation5 + $0x108] sm:$0xff]
    %v85 = vld [vmem:[#allocation5 + $0x110] sm:$0xff]
    %v86 = vld [vmem:[#allocation5 + $0x118] sm:$0xff]
    %v87 = vld [vmem:[#allocation5 + $0x120] sm:$0xff]
    %v88 = vld [vmem:[#allocation5 + $0x128] sm:$0xff]
    %v89 = vld [vmem:[#allocation5 + $0x130] sm:$0xff]
    %v90 = vld [vmem:[#allocation5 + $0x138] sm:$0xff]
    %v91 = vld [vmem:[#allocation5 + $0x140] sm:$0xff]
    %v92 = vld [vmem:[#allocation5 + $0x148] sm:$0xff]
    %v93 = vld [vmem:[#allocation5 + $0x150] sm:$0xff]
    %v94 = vld [vmem:[#allocation5 + $0x158] sm:$0xff]
    %v95 = vld [vmem:[#allocation5 + $0x160] sm:$0xff]
    %v96 = vld [vmem:[#allocation5 + $0x168] sm:$0xff]
    %v97 = vld [vmem:[#allocation5 + $0x170] sm:$0xff]
    %v98 = vld [vmem:[#allocation5 + $0x178] sm:$0xff]
    %v99 = vld [vmem:[#allocation5 + $0x180] sm:$0xff]
    %v100 = vld [vmem:[#allocation5 + $0x188] sm:$0xff]
    %v101 = vld [vmem:[#allocation5 + $0x190] sm:$0xff]
    %v102 = vld [vmem:[#allocation5 + $0x198] sm:$0xff]
    %v103 = vld [vmem:[#allocation5 + $0x1a0] sm:$0xff]
    %v104 = vld [vmem:[#allocation5 + $0x1a8] sm:$0xff]
    %v105 = vld [vmem:[#allocation5 + $0x1b0] sm:$0xff]
    %v106 = vld [vmem:[#allocation5 + $0x1b8] sm:$0xff]
    %v107 = vld [vmem:[#allocation5 + $0x1c0] sm:$0xff]
    %v108 = vld [vmem:[#allocation5 + $0x1c8] sm:$0xff]
    %v109 = vld [vmem:[#allocation5 + $0x1d0] sm:$0xff]
    %v110 = vld [vmem:[#allocation5 + $0x1d8] sm:$0xff]
    %v111 = vld [vmem:[#allocation5 + $0x1e0] sm:$0xff]
    %v112 = vld [vmem:[#allocation5 + $0x1e8] sm:$0xff]
    %v113 = vld [vmem:[#allocation5 + $0x1f0] sm:$0xff]
    %v114 = vld [vmem:[#allocation5 + $0x1f8] sm:$0xff]
    %v115 = vld [vmem:[#allocation5 + $0x200] sm:$0xff]
    %v116 = vld [vmem:[#allocation5 + $0x208] sm:$0xff]
    %v117 = vld [vmem:[#allocation5 + $0x210] sm:$0xff]
    %v118 = vld [vmem:[#allocation5 + $0x218] sm:$0xff]
    %v119 = vld [vmem:[#allocation5 + $0x220] sm:$0xff]
    %v120 = vld [vmem:[#allocation5 + $0x228] sm:$0xff]
    %v121 = vld [vmem:[#allocation5 + $0x230] sm:$0xff]
    %v122 = vld [vmem:[#allocation5 + $0x238] sm:$0xff]
    %v123 = vld [vmem:[#allocation5 + $0x240] sm:$0xff]
    %v124 = vld [vmem:[#allocation5 + $0x248] sm:$0xff]
    %v125 = vld [vmem:[#allocation5 + $0x250] sm:$0xff]
    %v126 = vld [vmem:[#allocation5 + $0x258] sm:$0xff]
    %v127 = vld [vmem:[#allocation5 + $0x260] sm:$0xff]
    %v128 = vld [vmem:[#allocation5 + $0x268] sm:$0xff]
    %v129 = vld [vmem:[#allocation5 + $0x270] sm:$0xff]
    %v130 = vld [vmem:[#allocation5 + $0x278] sm:$0xff]
    %v131 = vld [vmem:[#allocation5 + $0x280] sm:$0xff]
    %v132 = vld [vmem:[#allocation5 + $0x288] sm:$0xff]
    %v133 = vld [vmem:[#allocation5 + $0x290] sm:$0xff]
    %v134 = vld [vmem:[#allocation5 + $0x298] sm:$0xff]
    %v135 = vld [vmem:[#allocation5 + $0x2a0] sm:$0xff]
    %v136 = vld [vmem:[#allocation5 + $0x2a8] sm:$0xff]
    %v137 = vld [vmem:[#allocation5 + $0x2b0] sm:$0xff]
    %v138 = vld [vmem:[#allocation5 + $0x2b8] sm:$0xff]
    %v139 = vld [vmem:[#allocation5 + $0x2c0] sm:$0xff]
    %v140 = vld [vmem:[#allocation5 + $0x2c8] sm:$0xff]
    %v141 = vld [vmem:[#allocation5 + $0x2d0] sm:$0xff]
    %v142 = vld [vmem:[#allocation5 + $0x2d8] sm:$0xff]
    %v143 = vld [vmem:[#allocation5 + $0x2e0] sm:$0xff]
    %v144 = vld [vmem:[#allocation5 + $0x2e8] sm:$0xff]
    %v145 = vld [vmem:[#allocation5 + $0x2f0] sm:$0xff]
    %v146 = vld [vmem:[#allocation5 + $0x2f8] sm:$0xff]
    %v147 = vld [vmem:[#allocation5 + $0x300] sm:$0xff]
    %v148 = vld [vmem:[#allocation5 + $0x308] sm:$0xff]
    %v149 = vld [vmem:[#allocation5 + $0x310] sm:$0xff]
    %v150 = vld [vmem:[#allocation5 + $0x318] sm:$0xff]
    %v151 = vld [vmem:[#allocation5 + $0x320] sm:$0xff]
    %v152 = vld [vmem:[#allocation5 + $0x328] sm:$0xff]
    %v153 = vld [vmem:[#allocation5 + $0x330] sm:$0xff]
    %v154 = vld [vmem:[#allocation5 + $0x338] sm:$0xff]
    %v155 = vld [vmem:[#allocation5 + $0x340] sm:$0xff]
    %v156 = vld [vmem:[#allocation5 + $0x348] sm:$0xff]
    %v157 = vld [vmem:[#allocation5 + $0x350] sm:$0xff]
    %v158 = vld [vmem:[#allocation5 + $0x358] sm:$0xff]
    %v159 = vld [vmem:[#allocation5 + $0x360] sm:$0xff]
    %v160 = vld [vmem:[#allocation5 + $0x368] sm:$0xff]
    %v161 = vld [vmem:[#allocation5 + $0x370] sm:$0xff]
    %v162 = vld [vmem:[#allocation5 + $0x378] sm:$0xff]
    %v163 = vld [vmem:[#allocation5 + $0x380] sm:$0xff]
    %v164 = vld [vmem:[#allocation5 + $0x388] sm:$0xff]
    %v165 = vld [vmem:[#allocation5 + $0x390] sm:$0xff]
    %v166 = vld [vmem:[#allocation5 + $0x398] sm:$0xff]
    %v167 = vld [vmem:[#allocation5 + $0x3a0] sm:$0xff]
    %v168 = vld [vmem:[#allocation5 + $0x3a8] sm:$0xff]
    %v169 = vld [vmem:[#allocation5 + $0x3b0] sm:$0xff]
    %v170 = vld [vmem:[#allocation5 + $0x3b8] sm:$0xff]
    %v171 = vld [vmem:[#allocation5 + $0x3c0] sm:$0xff]
    %v172 = vld [vmem:[#allocation5 + $0x3c8] sm:$0xff]
    %v173 = vld [vmem:[#allocation5 + $0x3d0] sm:$0xff]
    %v174 = vld [vmem:[#allocation5 + $0x3d8] sm:$0xff]
    %v175 = vld [vmem:[#allocation5 + $0x3e0] sm:$0xff]
    %v176 = vld [vmem:[#allocation5 + $0x3e8] sm:$0xff]
    %v177 = vld [vmem:[#allocation5 + $0x3f0] sm:$0xff]
    %v178 = vld [vmem:[#allocation5 + $0x3f8] sm:$0xff]
    %v179 = vld [vmem:[#allocation5 + $0x400] sm:$0xff]
    %v180 = vld [vmem:[#allocation5 + $0x408] sm:$0xff]
    %v181 = vld [vmem:[#allocation5 + $0x410] sm:$0xff]
    %v182 = vld [vmem:[#allocation5 + $0x418] sm:$0xff]
    %v183 = vld [vmem:[#allocation5 + $0x420] sm:$0xff]
    %v184 = vld [vmem:[#allocation5 + $0x428] sm:$0xff]
    %v185 = vld [vmem:[#allocation5 + $0x430] sm:$0xff]
    %v186 = vld [vmem:[#allocation5 + $0x438] sm:$0xff]
    %v187 = vld [vmem:[#allocation5 + $0x440] sm:$0xff]
    %v188 = vld [vmem:[#allocation5 + $0x448] sm:$0xff]
    %v189 = vld [vmem:[#allocation5 + $0x450] sm:$0xff]
    %v190 = vld [vmem:[#allocation5 + $0x458] sm:$0xff]
    %v191 = vld [vmem:[#allocation5 + $0x460] sm:$0xff]
    %v192 = vld [vmem:[#allocation5 + $0x468] sm:$0xff]
    %v193 = vld [vmem:[#allocation5 + $0x470] sm:$0xff]
    %v194 = vld [vmem:[#allocation5 + $0x478] sm:$0xff]
    %v195 = vld [vmem:[#allocation5 + $0x480] sm:$0xff]
    %v196 = vld [vmem:[#allocation5 + $0x488] sm:$0xff]
    %v197 = vld [vmem:[#allocation5 + $0x490] sm:$0xff]
    %v198 = vld [vmem:[#allocation5 + $0x498] sm:$0xff]
    %v199 = vld [vmem:[#allocation5 + $0x4a0] sm:$0xff]
    %v200 = vld [vmem:[#allocation5 + $0x4a8] sm:$0xff]
    %v201 = vld [vmem:[#allocation5 + $0x4b0] sm:$0xff]
    %v202 = vld [vmem:[#allocation5 + $0x4b8] sm:$0xff]
    %v203 = vld [vmem:[#allocation5 + $0x4c0] sm:$0xff]
    %v204 = vld [vmem:[#allocation5 + $0x4c8] sm:$0xff]
    %v205 = vld [vmem:[#allocation5 + $0x4d0] sm:$0xff]
    %v206 = vld [vmem:[#allocation5 + $0x4d8] sm:$0xff]
    %v207 = vld [vmem:[#allocation5 + $0x4e0] sm:$0xff]
    %v208 = vld [vmem:[#allocation5 + $0x4e8] sm:$0xff]
    %v209 = vld [vmem:[#allocation5 + $0x4f0] sm:$0xff]
    %v210 = vld [vmem:[#allocation5 + $0x4f8] sm:$0xff]
    %v211 = vld [vmem:[#allocation5 + $0x500] sm:$0xff]
    %v212 = vld [vmem:[#allocation5 + $0x508] sm:$0xff]
    %v213 = vld [vmem:[#allocation5 + $0x510] sm:$0xff]
    %v214 = vld [vmem:[#allocation5 + $0x518] sm:$0xff]
    %v215 = vld [vmem:[#allocation5 + $0x520] sm:$0xff]
    %v216 = vld [vmem:[#allocation5 + $0x528] sm:$0xff]
    %v217 = vld [vmem:[#allocation5 + $0x530] sm:$0xff]
    %v218 = vld [vmem:[#allocation5 + $0x538] sm:$0xff]
    %v219 = vld [vmem:[#allocation5 + $0x540] sm:$0xff]
    %v220 = vld [vmem:[#allocation5 + $0x548] sm:$0xff]
    %v221 = vld [vmem:[#allocation5 + $0x550] sm:$0xff]
    %v222 = vld [vmem:[#allocation5 + $0x558] sm:$0xff]
    %v223 = vld [vmem:[#allocation5 + $0x560] sm:$0xff]
    %v224 = vld [vmem:[#allocation5 + $0x568] sm:$0xff]
    %v225 = vld [vmem:[#allocation5 + $0x570] sm:$0xff]
    %v226 = vld [vmem:[#allocation5 + $0x578] sm:$0xff]
    %v227 = vld [vmem:[#allocation5 + $0x580] sm:$0xff]
    %v228 = vld [vmem:[#allocation5 + $0x588] sm:$0xff]
    %v229 = vld [vmem:[#allocation5 + $0x590] sm:$0xff]
    %v230 = vld [vmem:[#allocation5 + $0x598] sm:$0xff]
    %v231 = vld [vmem:[#allocation5 + $0x5a0] sm:$0xff]
    %v232 = vld [vmem:[#allocation5 + $0x5a8] sm:$0xff]
    %v233 = vld [vmem:[#allocation5 + $0x5b0] sm:$0xff]
    %v234 = vld [vmem:[#allocation5 + $0x5b8] sm:$0xff]
    %v235 = vld [vmem:[#allocation5 + $0x5c0] sm:$0xff]
    %v236 = vld [vmem:[#allocation5 + $0x5c8] sm:$0xff]
    %v237 = vld [vmem:[#allocation5 + $0x5d0] sm:$0xff]
    %v238 = vld [vmem:[#allocation5 + $0x5d8] sm:$0xff]
    %v239 = vld [vmem:[#allocation5 + $0x5e0] sm:$0xff]
    %v240 = vld [vmem:[#allocation5 + $0x5e8] sm:$0xff]
    %v241 = vld [vmem:[#allocation5 + $0x5f0] sm:$0xff]
    %v242 = vld [vmem:[#allocation5 + $0x5f8] sm:$0xff]
    %v243 = vld [vmem:[#allocation5 + $0x600] sm:$0xff]
    %v244 = vld [vmem:[#allocation5 + $0x608] sm:$0xff]
    %v245 = vld [vmem:[#allocation5 + $0x610] sm:$0xff]
    %v246 = vld [vmem:[#allocation5 + $0x618] sm:$0xff]
    %v247 = vld [vmem:[#allocation5 + $0x620] sm:$0xff]
    %v248 = vld [vmem:[#allocation5 + $0x628] sm:$0xff]
    %v249 = vld [vmem:[#allocation5 + $0x630] sm:$0xff]
    %v250 = vld [vmem:[#allocation5 + $0x638] sm:$0xff]
    %v251 = vld [vmem:[#allocation5 + $0x640] sm:$0xff]
    %v252 = vld [vmem:[#allocation5 + $0x648] sm:$0xff]
    %v253 = vld [vmem:[#allocation5 + $0x650] sm:$0xff]
    %v254 = vld [vmem:[#allocation5 + $0x658] sm:$0xff]
    %v255 = vld [vmem:[#allocation5 + $0x660] sm:$0xff]
    %v256 = vld [vmem:[#allocation5 + $0x668] sm:$0xff]
    %v257 = vld [vmem:[#allocation5 + $0x670] sm:$0xff]
    %v258 = vld [vmem:[#allocation5 + $0x678] sm:$0xff]
    %v259 = vld [vmem:[#allocation5 + $0x680] sm:$0xff]
    %v260 = vld [vmem:[#allocation5 + $0x688] sm:$0xff]
    %v261 = vld [vmem:[#allocation5 + $0x690] sm:$0xff]
    %v262 = vld [vmem:[#allocation5 + $0x698] sm:$0xff]
    %v263 = vld [vmem:[#allocation5 + $0x6a0] sm:$0xff]
    %v264 = vld [vmem:[#allocation5 + $0x6a8] sm:$0xff]
    %v265 = vld [vmem:[#allocation5 + $0x6b0] sm:$0xff]
    %v266 = vld [vmem:[#allocation5 + $0x6b8] sm:$0xff]
    %v267 = vld [vmem:[#allocation5 + $0x6c0] sm:$0xff]
    %v268 = vld [vmem:[#allocation5 + $0x6c8] sm:$0xff]
    %v269 = vld [vmem:[#allocation5 + $0x6d0] sm:$0xff]
    %v270 = vld [vmem:[#allocation5 + $0x6d8] sm:$0xff]
    %v271 = vld [vmem:[#allocation5 + $0x6e0] sm:$0xff]
    %v272 = vld [vmem:[#allocation5 + $0x6e8] sm:$0xff]
    %v273 = vld [vmem:[#allocation5 + $0x6f0] sm:$0xff]
    %v274 = vld [vmem:[#allocation5 + $0x6f8] sm:$0xff]
    %v275 = vld [vmem:[#allocation5 + $0x700] sm:$0xff]
    %v276 = vld [vmem:[#allocation5 + $0x708] sm:$0xff]
    %v277 = vld [vmem:[#allocation5 + $0x710] sm:$0xff]
    %v278 = vld [vmem:[#allocation5 + $0x718] sm:$0xff]
    %v279 = vld [vmem:[#allocation5 + $0x720] sm:$0xff]
    %v280 = vld [vmem:[#allocation5 + $0x728] sm:$0xff]
    %v281 = vld [vmem:[#allocation5 + $0x730] sm:$0xff]
    %v282 = vld [vmem:[#allocation5 + $0x738] sm:$0xff]
    %v283 = vld [vmem:[#allocation5 + $0x740] sm:$0xff]
    %v284 = vld [vmem:[#allocation5 + $0x748] sm:$0xff]
    %v285 = vld [vmem:[#allocation5 + $0x750] sm:$0xff]
    %v286 = vld [vmem:[#allocation5 + $0x758] sm:$0xff]
    %v287 = vld [vmem:[#allocation5 + $0x760] sm:$0xff]
    %v288 = vld [vmem:[#allocation5 + $0x768] sm:$0xff]
    %v289 = vld [vmem:[#allocation5 + $0x770] sm:$0xff]
    %v290 = vld [vmem:[#allocation5 + $0x778] sm:$0xff]
    %v291 = vld [vmem:[#allocation5 + $0x780] sm:$0xff]
    %v292 = vld [vmem:[#allocation5 + $0x788] sm:$0xff]
    %v293 = vld [vmem:[#allocation5 + $0x790] sm:$0xff]
    %v294 = vld [vmem:[#allocation5 + $0x798] sm:$0xff]
    %v295 = vld [vmem:[#allocation5 + $0x7a0] sm:$0xff]
    %v296 = vld [vmem:[#allocation5 + $0x7a8] sm:$0xff]
    %v297 = vld [vmem:[#allocation5 + $0x7b0] sm:$0xff]
    %v298 = vld [vmem:[#allocation5 + $0x7b8] sm:$0xff]
    %v299 = vld [vmem:[#allocation5 + $0x7c0] sm:$0xff]
    %v300 = vld [vmem:[#allocation5 + $0x7c8] sm:$0xff]
    %v301 = vld [vmem:[#allocation5 + $0x7d0] sm:$0xff]
    %v302 = vld [vmem:[#allocation5 + $0x7d8] sm:$0xff]
    %v303 = vld [vmem:[#allocation5 + $0x7e0] sm:$0xff]
    %v304 = vld [vmem:[#allocation5 + $0x7e8] sm:$0xff]
    %v305 = vld [vmem:[#allocation5 + $0x7f0] sm:$0xff]
    %v306 = vld [vmem:[#allocation5 + $0x7f8] sm:$0xff]
    %v307 = vld [vmem:[%s2] sm:$0xf]
    %v309 = vlaneseq
    %v310 = vshrl.u32 %v309, 7
    %v311 = vsub.s32 0, %v310
    %v312 = vrot.slane %v307, %v311
    %v313 = vlaneseq
    %v314 = vshrl.u32 %v313, 7
    %v315 = vsub.s32 1, %v314
    %v316 = vrot.slane %v307, %v315
    %v317 = vlaneseq
    %v318 = vshrl.u32 %v317, 7
    %v319 = vsub.s32 2, %v318
    %v320 = vrot.slane %v307, %v319
    %v321 = vlaneseq
    %v322 = vshrl.u32 %v321, 7
    %v323 = vsub.s32 3, %v322
    %v324 = vrot.slane %v307, %v323
    %v337 = vunpack.c.l.b16 %v43
    %v338 = vunpack.c.h.b16 %v43
    %v339 = vunpack.c.l.b16 %v44
    %v340 = vunpack.c.h.b16 %v44
    %v341 = vunpack.c.l.b16 %v45
    %v342 = vunpack.c.h.b16 %v45
    %v343 = vunpack.c.l.b16 %v46
    %v344 = vunpack.c.h.b16 %v46
    %v345 = vunpack.c.l.b16 %v47
    %v346 = vunpack.c.h.b16 %v47
    %v347 = vunpack.c.l.b16 %v48
    %v348 = vunpack.c.h.b16 %v48
    %v349 = vunpack.c.l.b16 %v49
    %v350 = vunpack.c.h.b16 %v49
    %v351 = vunpack.c.l.b16 %v50
    %v352 = vunpack.c.h.b16 %v50
    %v353 = vpack.c.b16 %v345, %v337
    %v354 = vpack.c.b16 %v346, %v338
    %v355 = vpack.c.b16 %v347, %v339
    %v356 = vpack.c.b16 %v348, %v340
    %v357 = vpack.c.b16 %v349, %v341
    %v358 = vpack.c.b16 %v350, %v342
    %v359 = vpack.c.b16 %v351, %v343
    %v360 = vpack.c.b16 %v352, %v344
    %v625 = vunpack.c.l.b16 %v51
    %v626 = vunpack.c.h.b16 %v51
    %v627 = vunpack.c.l.b16 %v52
    %v628 = vunpack.c.h.b16 %v52
    %v629 = vunpack.c.l.b16 %v53
    %v630 = vunpack.c.h.b16 %v53
    %v631 = vunpack.c.l.b16 %v54
    %v632 = vunpack.c.h.b16 %v54
    %v633 = vunpack.c.l.b16 %v55
    %v634 = vunpack.c.h.b16 %v55
    %v635 = vunpack.c.l.b16 %v56
    %v636 = vunpack.c.h.b16 %v56
    %v637 = vunpack.c.l.b16 %v57
    %v638 = vunpack.c.h.b16 %v57
    %v639 = vunpack.c.l.b16 %v58
    %v640 = vunpack.c.h.b16 %v58
    %v641 = vunpack.c.l.b16 %v59
    %v642 = vunpack.c.h.b16 %v59
    %v643 = vunpack.c.l.b16 %v60
    %v644 = vunpack.c.h.b16 %v60
    %v645 = vunpack.c.l.b16 %v61
    %v646 = vunpack.c.h.b16 %v61
    %v647 = vunpack.c.l.b16 %v62
    %v648 = vunpack.c.h.b16 %v62
    %v649 = vunpack.c.l.b16 %v63
    %v650 = vunpack.c.h.b16 %v63
    %v651 = vunpack.c.l.b16 %v64
    %v652 = vunpack.c.h.b16 %v64
    %v653 = vunpack.c.l.b16 %v65
    %v654 = vunpack.c.h.b16 %v65
    %v655 = vunpack.c.l.b16 %v66
    %v656 = vunpack.c.h.b16 %v66
    %v657 = vunpack.c.l.b16 %v67
    %v658 = vunpack.c.h.b16 %v67
    %v659 = vunpack.c.l.b16 %v68
    %v660 = vunpack.c.h.b16 %v68
    %v661 = vunpack.c.l.b16 %v69
    %v662 = vunpack.c.h.b16 %v69
    %v663 = vunpack.c.l.b16 %v70
    %v664 = vunpack.c.h.b16 %v70
    %v665 = vunpack.c.l.b16 %v71
    %v666 = vunpack.c.h.b16 %v71
    %v667 = vunpack.c.l.b16 %v72
    %v668 = vunpack.c.h.b16 %v72
    %v669 = vunpack.c.l.b16 %v73
    %v670 = vunpack.c.h.b16 %v73
    %v671 = vunpack.c.l.b16 %v74
    %v672 = vunpack.c.h.b16 %v74
    %v673 = vunpack.c.l.b16 %v75
    %v674 = vunpack.c.h.b16 %v75
    %v675 = vunpack.c.l.b16 %v76
    %v676 = vunpack.c.h.b16 %v76
    %v677 = vunpack.c.l.b16 %v77
    %v678 = vunpack.c.h.b16 %v77
    %v679 = vunpack.c.l.b16 %v78
    %v680 = vunpack.c.h.b16 %v78
    %v681 = vunpack.c.l.b16 %v79
    %v682 = vunpack.c.h.b16 %v79
    %v683 = vunpack.c.l.b16 %v80
    %v684 = vunpack.c.h.b16 %v80
    %v685 = vunpack.c.l.b16 %v81
    %v686 = vunpack.c.h.b16 %v81
    %v687 = vunpack.c.l.b16 %v82
    %v688 = vunpack.c.h.b16 %v82
    %v689 = vunpack.c.l.b16 %v83
    %v690 = vunpack.c.h.b16 %v83
    %v691 = vunpack.c.l.b16 %v84
    %v692 = vunpack.c.h.b16 %v84
    %v693 = vunpack.c.l.b16 %v85
    %v694 = vunpack.c.h.b16 %v85
    %v695 = vunpack.c.l.b16 %v86
    %v696 = vunpack.c.h.b16 %v86
    %v697 = vunpack.c.l.b16 %v87
    %v698 = vunpack.c.h.b16 %v87
    %v699 = vunpack.c.l.b16 %v88
    %v700 = vunpack.c.h.b16 %v88
    %v701 = vunpack.c.l.b16 %v89
    %v702 = vunpack.c.h.b16 %v89
    %v703 = vunpack.c.l.b16 %v90
    %v704 = vunpack.c.h.b16 %v90
    %v705 = vunpack.c.l.b16 %v91
    %v706 = vunpack.c.h.b16 %v91
    %v707 = vunpack.c.l.b16 %v92
    %v708 = vunpack.c.h.b16 %v92
    %v709 = vunpack.c.l.b16 %v93
    %v710 = vunpack.c.h.b16 %v93
    %v711 = vunpack.c.l.b16 %v94
    %v712 = vunpack.c.h.b16 %v94
    %v713 = vunpack.c.l.b16 %v95
    %v714 = vunpack.c.h.b16 %v95
    %v715 = vunpack.c.l.b16 %v96
    %v716 = vunpack.c.h.b16 %v96
    %v717 = vunpack.c.l.b16 %v97
    %v718 = vunpack.c.h.b16 %v97
    %v719 = vunpack.c.l.b16 %v98
    %v720 = vunpack.c.h.b16 %v98
    %v721 = vunpack.c.l.b16 %v99
    %v722 = vunpack.c.h.b16 %v99
    %v723 = vunpack.c.l.b16 %v100
    %v724 = vunpack.c.h.b16 %v100
    %v725 = vunpack.c.l.b16 %v101
    %v726 = vunpack.c.h.b16 %v101
    %v727 = vunpack.c.l.b16 %v102
    %v728 = vunpack.c.h.b16 %v102
    %v729 = vunpack.c.l.b16 %v103
    %v730 = vunpack.c.h.b16 %v103
    %v731 = vunpack.c.l.b16 %v104
    %v732 = vunpack.c.h.b16 %v104
    %v733 = vunpack.c.l.b16 %v105
    %v734 = vunpack.c.h.b16 %v105
    %v735 = vunpack.c.l.b16 %v106
    %v736 = vunpack.c.h.b16 %v106
    %v737 = vunpack.c.l.b16 %v107
    %v738 = vunpack.c.h.b16 %v107
    %v739 = vunpack.c.l.b16 %v108
    %v740 = vunpack.c.h.b16 %v108
    %v741 = vunpack.c.l.b16 %v109
    %v742 = vunpack.c.h.b16 %v109
    %v743 = vunpack.c.l.b16 %v110
    %v744 = vunpack.c.h.b16 %v110
    %v745 = vunpack.c.l.b16 %v111
    %v746 = vunpack.c.h.b16 %v111
    %v747 = vunpack.c.l.b16 %v112
    %v748 = vunpack.c.h.b16 %v112
    %v749 = vunpack.c.l.b16 %v113
    %v750 = vunpack.c.h.b16 %v113
    %v751 = vunpack.c.l.b16 %v114
    %v752 = vunpack.c.h.b16 %v114
    %v753 = vunpack.c.l.b16 %v115
    %v754 = vunpack.c.h.b16 %v115
    %v755 = vunpack.c.l.b16 %v116
    %v756 = vunpack.c.h.b16 %v116
    %v757 = vunpack.c.l.b16 %v117
    %v758 = vunpack.c.h.b16 %v117
    %v759 = vunpack.c.l.b16 %v118
    %v760 = vunpack.c.h.b16 %v118
    %v761 = vunpack.c.l.b16 %v119
    %v762 = vunpack.c.h.b16 %v119
    %v763 = vunpack.c.l.b16 %v120
    %v764 = vunpack.c.h.b16 %v120
    %v765 = vunpack.c.l.b16 %v121
    %v766 = vunpack.c.h.b16 %v121
    %v767 = vunpack.c.l.b16 %v122
    %v768 = vunpack.c.h.b16 %v122
    %v769 = vunpack.c.l.b16 %v123
    %v770 = vunpack.c.h.b16 %v123
    %v771 = vunpack.c.l.b16 %v124
    %v772 = vunpack.c.h.b16 %v124
    %v773 = vunpack.c.l.b16 %v125
    %v774 = vunpack.c.h.b16 %v125
    %v775 = vunpack.c.l.b16 %v126
    %v776 = vunpack.c.h.b16 %v126
    %v777 = vunpack.c.l.b16 %v127
    %v778 = vunpack.c.h.b16 %v127
    %v779 = vunpack.c.l.b16 %v128
    %v780 = vunpack.c.h.b16 %v128
    %v781 = vunpack.c.l.b16 %v129
    %v782 = vunpack.c.h.b16 %v129
    %v783 = vunpack.c.l.b16 %v130
    %v784 = vunpack.c.h.b16 %v130
    %v785 = vunpack.c.l.b16 %v131
    %v786 = vunpack.c.h.b16 %v131
    %v787 = vunpack.c.l.b16 %v132
    %v788 = vunpack.c.h.b16 %v132
    %v789 = vunpack.c.l.b16 %v133
    %v790 = vunpack.c.h.b16 %v133
    %v791 = vunpack.c.l.b16 %v134
    %v792 = vunpack.c.h.b16 %v134
    %v793 = vunpack.c.l.b16 %v135
    %v794 = vunpack.c.h.b16 %v135
    %v795 = vunpack.c.l.b16 %v136
    %v796 = vunpack.c.h.b16 %v136
    %v797 = vunpack.c.l.b16 %v137
    %v798 = vunpack.c.h.b16 %v137
    %v799 = vunpack.c.l.b16 %v138
    %v800 = vunpack.c.h.b16 %v138
    %v801 = vunpack.c.l.b16 %v139
    %v802 = vunpack.c.h.b16 %v139
    %v803 = vunpack.c.l.b16 %v140
    %v804 = vunpack.c.h.b16 %v140
    %v805 = vunpack.c.l.b16 %v141
    %v806 = vunpack.c.h.b16 %v141
    %v807 = vunpack.c.l.b16 %v142
    %v808 = vunpack.c.h.b16 %v142
    %v809 = vunpack.c.l.b16 %v143
    %v810 = vunpack.c.h.b16 %v143
    %v811 = vunpack.c.l.b16 %v144
    %v812 = vunpack.c.h.b16 %v144
    %v813 = vunpack.c.l.b16 %v145
    %v814 = vunpack.c.h.b16 %v145
    %v815 = vunpack.c.l.b16 %v146
    %v816 = vunpack.c.h.b16 %v146
    %v817 = vunpack.c.l.b16 %v147
    %v818 = vunpack.c.h.b16 %v147
    %v819 = vunpack.c.l.b16 %v148
    %v820 = vunpack.c.h.b16 %v148
    %v821 = vunpack.c.l.b16 %v149
    %v822 = vunpack.c.h.b16 %v149
    %v823 = vunpack.c.l.b16 %v150
    %v824 = vunpack.c.h.b16 %v150
    %v825 = vunpack.c.l.b16 %v151
    %v826 = vunpack.c.h.b16 %v151
    %v827 = vunpack.c.l.b16 %v152
    %v828 = vunpack.c.h.b16 %v152
    %v829 = vunpack.c.l.b16 %v153
    %v830 = vunpack.c.h.b16 %v153
    %v831 = vunpack.c.l.b16 %v154
    %v832 = vunpack.c.h.b16 %v154
    %v833 = vunpack.c.l.b16 %v155
    %v834 = vunpack.c.h.b16 %v155
    %v835 = vunpack.c.l.b16 %v156
    %v836 = vunpack.c.h.b16 %v156
    %v837 = vunpack.c.l.b16 %v157
    %v838 = vunpack.c.h.b16 %v157
    %v839 = vunpack.c.l.b16 %v158
    %v840 = vunpack.c.h.b16 %v158
    %v841 = vunpack.c.l.b16 %v159
    %v842 = vunpack.c.h.b16 %v159
    %v843 = vunpack.c.l.b16 %v160
    %v844 = vunpack.c.h.b16 %v160
    %v845 = vunpack.c.l.b16 %v161
    %v846 = vunpack.c.h.b16 %v161
    %v847 = vunpack.c.l.b16 %v162
    %v848 = vunpack.c.h.b16 %v162
    %v849 = vunpack.c.l.b16 %v163
    %v850 = vunpack.c.h.b16 %v163
    %v851 = vunpack.c.l.b16 %v164
    %v852 = vunpack.c.h.b16 %v164
    %v853 = vunpack.c.l.b16 %v165
    %v854 = vunpack.c.h.b16 %v165
    %v855 = vunpack.c.l.b16 %v166
    %v856 = vunpack.c.h.b16 %v166
    %v857 = vunpack.c.l.b16 %v167
    %v858 = vunpack.c.h.b16 %v167
    %v859 = vunpack.c.l.b16 %v168
    %v860 = vunpack.c.h.b16 %v168
    %v861 = vunpack.c.l.b16 %v169
    %v862 = vunpack.c.h.b16 %v169
    %v863 = vunpack.c.l.b16 %v170
    %v864 = vunpack.c.h.b16 %v170
    %v865 = vunpack.c.l.b16 %v171
    %v866 = vunpack.c.h.b16 %v171
    %v867 = vunpack.c.l.b16 %v172
    %v868 = vunpack.c.h.b16 %v172
    %v869 = vunpack.c.l.b16 %v173
    %v870 = vunpack.c.h.b16 %v173
    %v871 = vunpack.c.l.b16 %v174
    %v872 = vunpack.c.h.b16 %v174
    %v873 = vunpack.c.l.b16 %v175
    %v874 = vunpack.c.h.b16 %v175
    %v875 = vunpack.c.l.b16 %v176
    %v876 = vunpack.c.h.b16 %v176
    %v877 = vunpack.c.l.b16 %v177
    %v878 = vunpack.c.h.b16 %v177
    %v879 = vunpack.c.l.b16 %v178
    %v880 = vunpack.c.h.b16 %v178
    %v881 = vunpack.c.l.b16 %v179
    %v882 = vunpack.c.h.b16 %v179
    %v883 = vunpack.c.l.b16 %v180
    %v884 = vunpack.c.h.b16 %v180
    %v885 = vunpack.c.l.b16 %v181
    %v886 = vunpack.c.h.b16 %v181
    %v887 = vunpack.c.l.b16 %v182
    %v888 = vunpack.c.h.b16 %v182
    %v889 = vunpack.c.l.b16 %v183
    %v890 = vunpack.c.h.b16 %v183
    %v891 = vunpack.c.l.b16 %v184
    %v892 = vunpack.c.h.b16 %v184
    %v893 = vunpack.c.l.b16 %v185
    %v894 = vunpack.c.h.b16 %v185
    %v895 = vunpack.c.l.b16 %v186
    %v896 = vunpack.c.h.b16 %v186
    %v897 = vunpack.c.l.b16 %v187
    %v898 = vunpack.c.h.b16 %v187
    %v899 = vunpack.c.l.b16 %v188
    %v900 = vunpack.c.h.b16 %v188
    %v901 = vunpack.c.l.b16 %v189
    %v902 = vunpack.c.h.b16 %v189
    %v903 = vunpack.c.l.b16 %v190
    %v904 = vunpack.c.h.b16 %v190
    %v905 = vunpack.c.l.b16 %v191
    %v906 = vunpack.c.h.b16 %v191
    %v907 = vunpack.c.l.b16 %v192
    %v908 = vunpack.c.h.b16 %v192
    %v909 = vunpack.c.l.b16 %v193
    %v910 = vunpack.c.h.b16 %v193
    %v911 = vunpack.c.l.b16 %v194
    %v912 = vunpack.c.h.b16 %v194
    %v913 = vunpack.c.l.b16 %v195
    %v914 = vunpack.c.h.b16 %v195
    %v915 = vunpack.c.l.b16 %v196
    %v916 = vunpack.c.h.b16 %v196
    %v917 = vunpack.c.l.b16 %v197
    %v918 = vunpack.c.h.b16 %v197
    %v919 = vunpack.c.l.b16 %v198
    %v920 = vunpack.c.h.b16 %v198
    %v921 = vunpack.c.l.b16 %v199
    %v922 = vunpack.c.h.b16 %v199
    %v923 = vunpack.c.l.b16 %v200
    %v924 = vunpack.c.h.b16 %v200
    %v925 = vunpack.c.l.b16 %v201
    %v926 = vunpack.c.h.b16 %v201
    %v927 = vunpack.c.l.b16 %v202
    %v928 = vunpack.c.h.b16 %v202
    %v929 = vunpack.c.l.b16 %v203
    %v930 = vunpack.c.h.b16 %v203
    %v931 = vunpack.c.l.b16 %v204
    %v932 = vunpack.c.h.b16 %v204
    %v933 = vunpack.c.l.b16 %v205
    %v934 = vunpack.c.h.b16 %v205
    %v935 = vunpack.c.l.b16 %v206
    %v936 = vunpack.c.h.b16 %v206
    %v937 = vunpack.c.l.b16 %v207
    %v938 = vunpack.c.h.b16 %v207
    %v939 = vunpack.c.l.b16 %v208
    %v940 = vunpack.c.h.b16 %v208
    %v941 = vunpack.c.l.b16 %v209
    %v942 = vunpack.c.h.b16 %v209
    %v943 = vunpack.c.l.b16 %v210
    %v944 = vunpack.c.h.b16 %v210
    %v945 = vunpack.c.l.b16 %v211
    %v946 = vunpack.c.h.b16 %v211
    %v947 = vunpack.c.l.b16 %v212
    %v948 = vunpack.c.h.b16 %v212
    %v949 = vunpack.c.l.b16 %v213
    %v950 = vunpack.c.h.b16 %v213
    %v951 = vunpack.c.l.b16 %v214
    %v952 = vunpack.c.h.b16 %v214
    %v953 = vunpack.c.l.b16 %v215
    %v954 = vunpack.c.h.b16 %v215
    %v955 = vunpack.c.l.b16 %v216
    %v956 = vunpack.c.h.b16 %v216
    %v957 = vunpack.c.l.b16 %v217
    %v958 = vunpack.c.h.b16 %v217
    %v959 = vunpack.c.l.b16 %v218
    %v960 = vunpack.c.h.b16 %v218
    %v961 = vunpack.c.l.b16 %v219
    %v962 = vunpack.c.h.b16 %v219
    %v963 = vunpack.c.l.b16 %v220
    %v964 = vunpack.c.h.b16 %v220
    %v965 = vunpack.c.l.b16 %v221
    %v966 = vunpack.c.h.b16 %v221
    %v967 = vunpack.c.l.b16 %v222
    %v968 = vunpack.c.h.b16 %v222
    %v969 = vunpack.c.l.b16 %v223
    %v970 = vunpack.c.h.b16 %v223
    %v971 = vunpack.c.l.b16 %v224
    %v972 = vunpack.c.h.b16 %v224
    %v973 = vunpack.c.l.b16 %v225
    %v974 = vunpack.c.h.b16 %v225
    %v975 = vunpack.c.l.b16 %v226
    %v976 = vunpack.c.h.b16 %v226
    %v977 = vunpack.c.l.b16 %v227
    %v978 = vunpack.c.h.b16 %v227
    %v979 = vunpack.c.l.b16 %v228
    %v980 = vunpack.c.h.b16 %v228
    %v981 = vunpack.c.l.b16 %v229
    %v982 = vunpack.c.h.b16 %v229
    %v983 = vunpack.c.l.b16 %v230
    %v984 = vunpack.c.h.b16 %v230
    %v985 = vunpack.c.l.b16 %v231
    %v986 = vunpack.c.h.b16 %v231
    %v987 = vunpack.c.l.b16 %v232
    %v988 = vunpack.c.h.b16 %v232
    %v989 = vunpack.c.l.b16 %v233
    %v990 = vunpack.c.h.b16 %v233
    %v991 = vunpack.c.l.b16 %v234
    %v992 = vunpack.c.h.b16 %v234
    %v993 = vunpack.c.l.b16 %v235
    %v994 = vunpack.c.h.b16 %v235
    %v995 = vunpack.c.l.b16 %v236
    %v996 = vunpack.c.h.b16 %v236
    %v997 = vunpack.c.l.b16 %v237
    %v998 = vunpack.c.h.b16 %v237
    %v999 = vunpack.c.l.b16 %v238
    %v1000 = vunpack.c.h.b16 %v238
    %v1001 = vunpack.c.l.b16 %v239
    %v1002 = vunpack.c.h.b16 %v239
    %v1003 = vunpack.c.l.b16 %v240
    %v1004 = vunpack.c.h.b16 %v240
    %v1005 = vunpack.c.l.b16 %v241
    %v1006 = vunpack.c.h.b16 %v241
    %v1007 = vunpack.c.l.b16 %v242
    %v1008 = vunpack.c.h.b16 %v242
    %v1009 = vunpack.c.l.b16 %v243
    %v1010 = vunpack.c.h.b16 %v243
    %v1011 = vunpack.c.l.b16 %v244
    %v1012 = vunpack.c.h.b16 %v244
    %v1013 = vunpack.c.l.b16 %v245
    %v1014 = vunpack.c.h.b16 %v245
    %v1015 = vunpack.c.l.b16 %v246
    %v1016 = vunpack.c.h.b16 %v246
    %v1017 = vunpack.c.l.b16 %v247
    %v1018 = vunpack.c.h.b16 %v247
    %v1019 = vunpack.c.l.b16 %v248
    %v1020 = vunpack.c.h.b16 %v248
    %v1021 = vunpack.c.l.b16 %v249
    %v1022 = vunpack.c.h.b16 %v249
    %v1023 = vunpack.c.l.b16 %v250
    %v1024 = vunpack.c.h.b16 %v250
    %v1025 = vunpack.c.l.b16 %v251
    %v1026 = vunpack.c.h.b16 %v251
    %v1027 = vunpack.c.l.b16 %v252
    %v1028 = vunpack.c.h.b16 %v252
    %v1029 = vunpack.c.l.b16 %v253
    %v1030 = vunpack.c.h.b16 %v253
    %v1031 = vunpack.c.l.b16 %v254
    %v1032 = vunpack.c.h.b16 %v254
    %v1033 = vunpack.c.l.b16 %v255
    %v1034 = vunpack.c.h.b16 %v255
    %v1035 = vunpack.c.l.b16 %v256
    %v1036 = vunpack.c.h.b16 %v256
    %v1037 = vunpack.c.l.b16 %v257
    %v1038 = vunpack.c.h.b16 %v257
    %v1039 = vunpack.c.l.b16 %v258
    %v1040 = vunpack.c.h.b16 %v258
    %v1041 = vunpack.c.l.b16 %v259
    %v1042 = vunpack.c.h.b16 %v259
    %v1043 = vunpack.c.l.b16 %v260
    %v1044 = vunpack.c.h.b16 %v260
    %v1045 = vunpack.c.l.b16 %v261
    %v1046 = vunpack.c.h.b16 %v261
    %v1047 = vunpack.c.l.b16 %v262
    %v1048 = vunpack.c.h.b16 %v262
    %v1049 = vunpack.c.l.b16 %v263
    %v1050 = vunpack.c.h.b16 %v263
    %v1051 = vunpack.c.l.b16 %v264
    %v1052 = vunpack.c.h.b16 %v264
    %v1053 = vunpack.c.l.b16 %v265
    %v1054 = vunpack.c.h.b16 %v265
    %v1055 = vunpack.c.l.b16 %v266
    %v1056 = vunpack.c.h.b16 %v266
    %v1057 = vunpack.c.l.b16 %v267
    %v1058 = vunpack.c.h.b16 %v267
    %v1059 = vunpack.c.l.b16 %v268
    %v1060 = vunpack.c.h.b16 %v268
    %v1061 = vunpack.c.l.b16 %v269
    %v1062 = vunpack.c.h.b16 %v269
    %v1063 = vunpack.c.l.b16 %v270
    %v1064 = vunpack.c.h.b16 %v270
    %v1065 = vunpack.c.l.b16 %v271
    %v1066 = vunpack.c.h.b16 %v271
    %v1067 = vunpack.c.l.b16 %v272
    %v1068 = vunpack.c.h.b16 %v272
    %v1069 = vunpack.c.l.b16 %v273
    %v1070 = vunpack.c.h.b16 %v273
    %v1071 = vunpack.c.l.b16 %v274
    %v1072 = vunpack.c.h.b16 %v274
    %v1073 = vunpack.c.l.b16 %v275
    %v1074 = vunpack.c.h.b16 %v275
    %v1075 = vunpack.c.l.b16 %v276
    %v1076 = vunpack.c.h.b16 %v276
    %v1077 = vunpack.c.l.b16 %v277
    %v1078 = vunpack.c.h.b16 %v277
    %v1079 = vunpack.c.l.b16 %v278
    %v1080 = vunpack.c.h.b16 %v278
    %v1081 = vunpack.c.l.b16 %v279
    %v1082 = vunpack.c.h.b16 %v279
    %v1083 = vunpack.c.l.b16 %v280
    %v1084 = vunpack.c.h.b16 %v280
    %v1085 = vunpack.c.l.b16 %v281
    %v1086 = vunpack.c.h.b16 %v281
    %v1087 = vunpack.c.l.b16 %v282
    %v1088 = vunpack.c.h.b16 %v282
    %v1089 = vunpack.c.l.b16 %v283
    %v1090 = vunpack.c.h.b16 %v283
    %v1091 = vunpack.c.l.b16 %v284
    %v1092 = vunpack.c.h.b16 %v284
    %v1093 = vunpack.c.l.b16 %v285
    %v1094 = vunpack.c.h.b16 %v285
    %v1095 = vunpack.c.l.b16 %v286
    %v1096 = vunpack.c.h.b16 %v286
    %v1097 = vunpack.c.l.b16 %v287
    %v1098 = vunpack.c.h.b16 %v287
    %v1099 = vunpack.c.l.b16 %v288
    %v1100 = vunpack.c.h.b16 %v288
    %v1101 = vunpack.c.l.b16 %v289
    %v1102 = vunpack.c.h.b16 %v289
    %v1103 = vunpack.c.l.b16 %v290
    %v1104 = vunpack.c.h.b16 %v290
    %v1105 = vunpack.c.l.b16 %v291
    %v1106 = vunpack.c.h.b16 %v291
    %v1107 = vunpack.c.l.b16 %v292
    %v1108 = vunpack.c.h.b16 %v292
    %v1109 = vunpack.c.l.b16 %v293
    %v1110 = vunpack.c.h.b16 %v293
    %v1111 = vunpack.c.l.b16 %v294
    %v1112 = vunpack.c.h.b16 %v294
    %v1113 = vunpack.c.l.b16 %v295
    %v1114 = vunpack.c.h.b16 %v295
    %v1115 = vunpack.c.l.b16 %v296
    %v1116 = vunpack.c.h.b16 %v296
    %v1117 = vunpack.c.l.b16 %v297
    %v1118 = vunpack.c.h.b16 %v297
    %v1119 = vunpack.c.l.b16 %v298
    %v1120 = vunpack.c.h.b16 %v298
    %v1121 = vunpack.c.l.b16 %v299
    %v1122 = vunpack.c.h.b16 %v299
    %v1123 = vunpack.c.l.b16 %v300
    %v1124 = vunpack.c.h.b16 %v300
    %v1125 = vunpack.c.l.b16 %v301
    %v1126 = vunpack.c.h.b16 %v301
    %v1127 = vunpack.c.l.b16 %v302
    %v1128 = vunpack.c.h.b16 %v302
    %v1129 = vunpack.c.l.b16 %v303
    %v1130 = vunpack.c.h.b16 %v303
    %v1131 = vunpack.c.l.b16 %v304
    %v1132 = vunpack.c.h.b16 %v304
    %v1133 = vunpack.c.l.b16 %v305
    %v1134 = vunpack.c.h.b16 %v305
    %v1135 = vunpack.c.l.b16 %v306
    %v1136 = vunpack.c.h.b16 %v306
    %v1137 = vpack.c.b16 %v629, %v625
    %v1138 = vpack.c.b16 %v630, %v626
    %v1139 = vpack.c.b16 %v631, %v627
    %v1140 = vpack.c.b16 %v632, %v628
    %v1141 = vpack.c.b16 %v637, %v633
    %v1142 = vpack.c.b16 %v638, %v634
    %v1143 = vpack.c.b16 %v639, %v635
    %v1144 = vpack.c.b16 %v640, %v636
    %v1145 = vpack.c.b16 %v645, %v641
    %v1146 = vpack.c.b16 %v646, %v642
    %v1147 = vpack.c.b16 %v647, %v643
    %v1148 = vpack.c.b16 %v648, %v644
    %v1149 = vpack.c.b16 %v653, %v649
    %v1150 = vpack.c.b16 %v654, %v650
    %v1151 = vpack.c.b16 %v655, %v651
    %v1152 = vpack.c.b16 %v656, %v652
    %v1153 = vpack.c.b16 %v661, %v657
    %v1154 = vpack.c.b16 %v662, %v658
    %v1155 = vpack.c.b16 %v663, %v659
    %v1156 = vpack.c.b16 %v664, %v660
    %v1157 = vpack.c.b16 %v669, %v665
    %v1158 = vpack.c.b16 %v670, %v666
    %v1159 = vpack.c.b16 %v671, %v667
    %v1160 = vpack.c.b16 %v672, %v668
    %v1161 = vpack.c.b16 %v677, %v673
    %v1162 = vpack.c.b16 %v678, %v674
    %v1163 = vpack.c.b16 %v679, %v675
    %v1164 = vpack.c.b16 %v680, %v676
    %v1165 = vpack.c.b16 %v685, %v681
    %v1166 = vpack.c.b16 %v686, %v682
    %v1167 = vpack.c.b16 %v687, %v683
    %v1168 = vpack.c.b16 %v688, %v684
    %v1169 = vpack.c.b16 %v693, %v689
    %v1170 = vpack.c.b16 %v694, %v690
    %v1171 = vpack.c.b16 %v695, %v691
    %v1172 = vpack.c.b16 %v696, %v692
    %v1173 = vpack.c.b16 %v701, %v697
    %v1174 = vpack.c.b16 %v702, %v698
    %v1175 = vpack.c.b16 %v703, %v699
    %v1176 = vpack.c.b16 %v704, %v700
    %v1177 = vpack.c.b16 %v709, %v705
    %v1178 = vpack.c.b16 %v710, %v706
    %v1179 = vpack.c.b16 %v711, %v707
    %v1180 = vpack.c.b16 %v712, %v708
    %v1181 = vpack.c.b16 %v717, %v713
    %v1182 = vpack.c.b16 %v718, %v714
    %v1183 = vpack.c.b16 %v719, %v715
    %v1184 = vpack.c.b16 %v720, %v716
    %v1185 = vpack.c.b16 %v725, %v721
    %v1186 = vpack.c.b16 %v726, %v722
    %v1187 = vpack.c.b16 %v727, %v723
    %v1188 = vpack.c.b16 %v728, %v724
    %v1189 = vpack.c.b16 %v733, %v729
    %v1190 = vpack.c.b16 %v734, %v730
    %v1191 = vpack.c.b16 %v735, %v731
    %v1192 = vpack.c.b16 %v736, %v732
    %v1193 = vpack.c.b16 %v741, %v737
    %v1194 = vpack.c.b16 %v742, %v738
    %v1195 = vpack.c.b16 %v743, %v739
    %v1196 = vpack.c.b16 %v744, %v740
    %v1197 = vpack.c.b16 %v749, %v745
    %v1198 = vpack.c.b16 %v750, %v746
    %v1199 = vpack.c.b16 %v751, %v747
    %v1200 = vpack.c.b16 %v752, %v748
    %v1201 = vpack.c.b16 %v757, %v753
    %v1202 = vpack.c.b16 %v758, %v754
    %v1203 = vpack.c.b16 %v759, %v755
    %v1204 = vpack.c.b16 %v760, %v756
    %v1205 = vpack.c.b16 %v765, %v761
    %v1206 = vpack.c.b16 %v766, %v762
    %v1207 = vpack.c.b16 %v767, %v763
    %v1208 = vpack.c.b16 %v768, %v764
    %v1209 = vpack.c.b16 %v773, %v769
    %v1210 = vpack.c.b16 %v774, %v770
    %v1211 = vpack.c.b16 %v775, %v771
    %v1212 = vpack.c.b16 %v776, %v772
    %v1213 = vpack.c.b16 %v781, %v777
    %v1214 = vpack.c.b16 %v782, %v778
    %v1215 = vpack.c.b16 %v783, %v779
    %v1216 = vpack.c.b16 %v784, %v780
    %v1217 = vpack.c.b16 %v789, %v785
    %v1218 = vpack.c.b16 %v790, %v786
    %v1219 = vpack.c.b16 %v791, %v787
    %v1220 = vpack.c.b16 %v792, %v788
    %v1221 = vpack.c.b16 %v797, %v793
    %v1222 = vpack.c.b16 %v798, %v794
    %v1223 = vpack.c.b16 %v799, %v795
    %v1224 = vpack.c.b16 %v800, %v796
    %v1225 = vpack.c.b16 %v805, %v801
    %v1226 = vpack.c.b16 %v806, %v802
    %v1227 = vpack.c.b16 %v807, %v803
    %v1228 = vpack.c.b16 %v808, %v804
    %v1229 = vpack.c.b16 %v813, %v809
    %v1230 = vpack.c.b16 %v814, %v810
    %v1231 = vpack.c.b16 %v815, %v811
    %v1232 = vpack.c.b16 %v816, %v812
    %v1233 = vpack.c.b16 %v821, %v817
    %v1234 = vpack.c.b16 %v822, %v818
    %v1235 = vpack.c.b16 %v823, %v819
    %v1236 = vpack.c.b16 %v824, %v820
    %v1237 = vpack.c.b16 %v829, %v825
    %v1238 = vpack.c.b16 %v830, %v826
    %v1239 = vpack.c.b16 %v831, %v827
    %v1240 = vpack.c.b16 %v832, %v828
    %v1241 = vpack.c.b16 %v837, %v833
    %v1242 = vpack.c.b16 %v838, %v834
    %v1243 = vpack.c.b16 %v839, %v835
    %v1244 = vpack.c.b16 %v840, %v836
    %v1245 = vpack.c.b16 %v845, %v841
    %v1246 = vpack.c.b16 %v846, %v842
    %v1247 = vpack.c.b16 %v847, %v843
    %v1248 = vpack.c.b16 %v848, %v844
    %v1249 = vpack.c.b16 %v853, %v849
    %v1250 = vpack.c.b16 %v854, %v850
    %v1251 = vpack.c.b16 %v855, %v851
    %v1252 = vpack.c.b16 %v856, %v852
    %v1253 = vpack.c.b16 %v861, %v857
    %v1254 = vpack.c.b16 %v862, %v858
    %v1255 = vpack.c.b16 %v863, %v859
    %v1256 = vpack.c.b16 %v864, %v860
    %v1257 = vpack.c.b16 %v869, %v865
    %v1258 = vpack.c.b16 %v870, %v866
    %v1259 = vpack.c.b16 %v871, %v867
    %v1260 = vpack.c.b16 %v872, %v868
    %v1261 = vpack.c.b16 %v877, %v873
    %v1262 = vpack.c.b16 %v878, %v874
    %v1263 = vpack.c.b16 %v879, %v875
    %v1264 = vpack.c.b16 %v880, %v876
    %v1265 = vpack.c.b16 %v885, %v881
    %v1266 = vpack.c.b16 %v886, %v882
    %v1267 = vpack.c.b16 %v887, %v883
    %v1268 = vpack.c.b16 %v888, %v884
    %v1269 = vpack.c.b16 %v893, %v889
    %v1270 = vpack.c.b16 %v894, %v890
    %v1271 = vpack.c.b16 %v895, %v891
    %v1272 = vpack.c.b16 %v896, %v892
    %v1273 = vpack.c.b16 %v901, %v897
    %v1274 = vpack.c.b16 %v902, %v898
    %v1275 = vpack.c.b16 %v903, %v899
    %v1276 = vpack.c.b16 %v904, %v900
    %v1277 = vpack.c.b16 %v909, %v905
    %v1278 = vpack.c.b16 %v910, %v906
    %v1279 = vpack.c.b16 %v911, %v907
    %v1280 = vpack.c.b16 %v912, %v908
    %v1281 = vpack.c.b16 %v917, %v913
    %v1282 = vpack.c.b16 %v918, %v914
    %v1283 = vpack.c.b16 %v919, %v915
    %v1284 = vpack.c.b16 %v920, %v916
    %v1285 = vpack.c.b16 %v925, %v921
    %v1286 = vpack.c.b16 %v926, %v922
    %v1287 = vpack.c.b16 %v927, %v923
    %v1288 = vpack.c.b16 %v928, %v924
    %v1289 = vpack.c.b16 %v933, %v929
    %v1290 = vpack.c.b16 %v934, %v930
    %v1291 = vpack.c.b16 %v935, %v931
    %v1292 = vpack.c.b16 %v936, %v932
    %v1293 = vpack.c.b16 %v941, %v937
    %v1294 = vpack.c.b16 %v942, %v938
    %v1295 = vpack.c.b16 %v943, %v939
    %v1296 = vpack.c.b16 %v944, %v940
    %v1297 = vpack.c.b16 %v949, %v945
    %v1298 = vpack.c.b16 %v950, %v946
    %v1299 = vpack.c.b16 %v951, %v947
    %v1300 = vpack.c.b16 %v952, %v948
    %v1301 = vpack.c.b16 %v957, %v953
    %v1302 = vpack.c.b16 %v958, %v954
    %v1303 = vpack.c.b16 %v959, %v955
    %v1304 = vpack.c.b16 %v960, %v956
    %v1305 = vpack.c.b16 %v965, %v961
    %v1306 = vpack.c.b16 %v966, %v962
    %v1307 = vpack.c.b16 %v967, %v963
    %v1308 = vpack.c.b16 %v968, %v964
    %v1309 = vpack.c.b16 %v973, %v969
    %v1310 = vpack.c.b16 %v974, %v970
    %v1311 = vpack.c.b16 %v975, %v971
    %v1312 = vpack.c.b16 %v976, %v972
    %v1313 = vpack.c.b16 %v981, %v977
    %v1314 = vpack.c.b16 %v982, %v978
    %v1315 = vpack.c.b16 %v983, %v979
    %v1316 = vpack.c.b16 %v984, %v980
    %v1317 = vpack.c.b16 %v989, %v985
    %v1318 = vpack.c.b16 %v990, %v986
    %v1319 = vpack.c.b16 %v991, %v987
    %v1320 = vpack.c.b16 %v992, %v988
    %v1321 = vpack.c.b16 %v997, %v993
    %v1322 = vpack.c.b16 %v998, %v994
    %v1323 = vpack.c.b16 %v999, %v995
    %v1324 = vpack.c.b16 %v1000, %v996
    %v1325 = vpack.c.b16 %v1005, %v1001
    %v1326 = vpack.c.b16 %v1006, %v1002
    %v1327 = vpack.c.b16 %v1007, %v1003
    %v1328 = vpack.c.b16 %v1008, %v1004
    %v1329 = vpack.c.b16 %v1013, %v1009
    %v1330 = vpack.c.b16 %v1014, %v1010
    %v1331 = vpack.c.b16 %v1015, %v1011
    %v1332 = vpack.c.b16 %v1016, %v1012
    %v1333 = vpack.c.b16 %v1021, %v1017
    %v1334 = vpack.c.b16 %v1022, %v1018
    %v1335 = vpack.c.b16 %v1023, %v1019
    %v1336 = vpack.c.b16 %v1024, %v1020
    %v1337 = vpack.c.b16 %v1029, %v1025
    %v1338 = vpack.c.b16 %v1030, %v1026
    %v1339 = vpack.c.b16 %v1031, %v1027
    %v1340 = vpack.c.b16 %v1032, %v1028
    %v1341 = vpack.c.b16 %v1037, %v1033
    %v1342 = vpack.c.b16 %v1038, %v1034
    %v1343 = vpack.c.b16 %v1039, %v1035
    %v1344 = vpack.c.b16 %v1040, %v1036
    %v1345 = vpack.c.b16 %v1045, %v1041
    %v1346 = vpack.c.b16 %v1046, %v1042
    %v1347 = vpack.c.b16 %v1047, %v1043
    %v1348 = vpack.c.b16 %v1048, %v1044
    %v1349 = vpack.c.b16 %v1053, %v1049
    %v1350 = vpack.c.b16 %v1054, %v1050
    %v1351 = vpack.c.b16 %v1055, %v1051
    %v1352 = vpack.c.b16 %v1056, %v1052
    %v1353 = vpack.c.b16 %v1061, %v1057
    %v1354 = vpack.c.b16 %v1062, %v1058
    %v1355 = vpack.c.b16 %v1063, %v1059
    %v1356 = vpack.c.b16 %v1064, %v1060
    %v1357 = vpack.c.b16 %v1069, %v1065
    %v1358 = vpack.c.b16 %v1070, %v1066
    %v1359 = vpack.c.b16 %v1071, %v1067
    %v1360 = vpack.c.b16 %v1072, %v1068
    %v1361 = vpack.c.b16 %v1077, %v1073
    %v1362 = vpack.c.b16 %v1078, %v1074
    %v1363 = vpack.c.b16 %v1079, %v1075
    %v1364 = vpack.c.b16 %v1080, %v1076
    %v1365 = vpack.c.b16 %v1085, %v1081
    %v1366 = vpack.c.b16 %v1086, %v1082
    %v1367 = vpack.c.b16 %v1087, %v1083
    %v1368 = vpack.c.b16 %v1088, %v1084
    %v1369 = vpack.c.b16 %v1093, %v1089
    %v1370 = vpack.c.b16 %v1094, %v1090
    %v1371 = vpack.c.b16 %v1095, %v1091
    %v1372 = vpack.c.b16 %v1096, %v1092
    %v1373 = vpack.c.b16 %v1101, %v1097
    %v1374 = vpack.c.b16 %v1102, %v1098
    %v1375 = vpack.c.b16 %v1103, %v1099
    %v1376 = vpack.c.b16 %v1104, %v1100
    %v1377 = vpack.c.b16 %v1109, %v1105
    %v1378 = vpack.c.b16 %v1110, %v1106
    %v1379 = vpack.c.b16 %v1111, %v1107
    %v1380 = vpack.c.b16 %v1112, %v1108
    %v1381 = vpack.c.b16 %v1117, %v1113
    %v1382 = vpack.c.b16 %v1118, %v1114
    %v1383 = vpack.c.b16 %v1119, %v1115
    %v1384 = vpack.c.b16 %v1120, %v1116
    %v1385 = vpack.c.b16 %v1125, %v1121
    %v1386 = vpack.c.b16 %v1126, %v1122
    %v1387 = vpack.c.b16 %v1127, %v1123
    %v1388 = vpack.c.b16 %v1128, %v1124
    %v1389 = vpack.c.b16 %v1133, %v1129
    %v1390 = vpack.c.b16 %v1134, %v1130
    %v1391 = vpack.c.b16 %v1135, %v1131
    %v1392 = vpack.c.b16 %v1136, %v1132
    %1649 = vmatprep.subr.bf16.mxu0 %v1138
    %1650 = vmatpush1.bf16.msra.mxu0 %v1137
    %1651 = vmatprep.subr.bf16.mxu0 %v1142
    %1652 = vmatpush1.bf16.msra.mxu0 %v1141
    %1653 = vmatprep.subr.bf16.mxu0 %v1146
    %1654 = vmatpush1.bf16.msra.mxu0 %v1145
    %1655 = vmatprep.subr.bf16.mxu0 %v1150
    %1656 = vmatpush1.bf16.msra.mxu0 %v1149
    %1657 = vmatprep.subr.bf16.mxu0 %v1154
    %1658 = vmatpush1.bf16.msra.mxu0 %v1153
    %1659 = vmatprep.subr.bf16.mxu0 %v1158
    %1660 = vmatpush1.bf16.msra.mxu0 %v1157
    %1661 = vmatprep.subr.bf16.mxu0 %v1162
    %1662 = vmatpush1.bf16.msra.mxu0 %v1161
    %1663 = vmatprep.subr.bf16.mxu0 %v1166
    %1664 = vmatpush1.bf16.msra.mxu0 %v1165
    %1665 = vmatprep.subr.bf16.mxu0 %v1170
    %1666 = vmatpush1.bf16.msra.mxu0 %v1169
    %1667 = vmatprep.subr.bf16.mxu0 %v1174
    %1668 = vmatpush1.bf16.msra.mxu0 %v1173
    %1669 = vmatprep.subr.bf16.mxu0 %v1178
    %1670 = vmatpush1.bf16.msra.mxu0 %v1177
    %1671 = vmatprep.subr.bf16.mxu0 %v1182
    %1672 = vmatpush1.bf16.msra.mxu0 %v1181
    %1673 = vmatprep.subr.bf16.mxu0 %v1186
    %1674 = vmatpush1.bf16.msra.mxu0 %v1185
    %1675 = vmatprep.subr.bf16.mxu0 %v1190
    %1676 = vmatpush1.bf16.msra.mxu0 %v1189
    %1677 = vmatprep.subr.bf16.mxu0 %v1194
    %1678 = vmatpush1.bf16.msra.mxu0 %v1193
    %1679 = vmatprep.subr.bf16.mxu0 %v1198
    %1680 = vmatpush1.bf16.msra.mxu0 %v1197
    %1681 = vmatprep.mubr.bf16.mxu0 %v354
    %1682 = vmatmul.mubr.bf16.gmra.mrb[0].mxu0 %v353
    %v1683 = vpop.f32.mrb[0].mxu0
    %v1684 = vadd.f32 %v312, %v1683
    %v1685 = vpop.f32.mrb[0].mxu0
    %v1686 = vadd.f32 %v316, %v1685
    %v1687 = vpop.f32.mrb[0].mxu0
    %v1688 = vadd.f32 %v312, %v1687
    %v1689 = vpop.f32.mrb[0].mxu0
    %v1690 = vadd.f32 %v316, %v1689
    %1691 = vdwg.mxu0
    %1692 = vmatprep.subr.bf16.mxu0 %v1202
    %1693 = vmatpush1.bf16.msra.mxu0 %v1201
    %1694 = vmatprep.subr.bf16.mxu0 %v1206
    %1695 = vmatpush1.bf16.msra.mxu0 %v1205
    %1696 = vmatprep.subr.bf16.mxu0 %v1210
    %1697 = vmatpush1.bf16.msra.mxu0 %v1209
    %1698 = vmatprep.subr.bf16.mxu0 %v1214
    %1699 = vmatpush1.bf16.msra.mxu0 %v1213
    %1700 = vmatprep.subr.bf16.mxu0 %v1218
    %1701 = vmatpush1.bf16.msra.mxu0 %v1217
    %1702 = vmatprep.subr.bf16.mxu0 %v1222
    %1703 = vmatpush1.bf16.msra.mxu0 %v1221
    %1704 = vmatprep.subr.bf16.mxu0 %v1226
    %1705 = vmatpush1.bf16.msra.mxu0 %v1225
    %1706 = vmatprep.subr.bf16.mxu0 %v1230
    %1707 = vmatpush1.bf16.msra.mxu0 %v1229
    %1708 = vmatprep.subr.bf16.mxu0 %v1234
    %1709 = vmatpush1.bf16.msra.mxu0 %v1233
    %1710 = vmatprep.subr.bf16.mxu0 %v1238
    %1711 = vmatpush1.bf16.msra.mxu0 %v1237
    %1712 = vmatprep.subr.bf16.mxu0 %v1242
    %1713 = vmatpush1.bf16.msra.mxu0 %v1241
    %1714 = vmatprep.subr.bf16.mxu0 %v1246
    %1715 = vmatpush1.bf16.msra.mxu0 %v1245
    %1716 = vmatprep.subr.bf16.mxu0 %v1250
    %1717 = vmatpush1.bf16.msra.mxu0 %v1249
    %1718 = vmatprep.subr.bf16.mxu0 %v1254
    %1719 = vmatpush1.bf16.msra.mxu0 %v1253
    %1720 = vmatprep.subr.bf16.mxu0 %v1258
    %1721 = vmatpush1.bf16.msra.mxu0 %v1257
    %1722 = vmatprep.subr.bf16.mxu0 %v1262
    %1723 = vmatpush1.bf16.msra.mxu0 %v1261
    %1724 = vmatprep.mubr.bf16.mxu0 %v356
    %1725 = vmatmul.mubr.bf16.gmra.mrb[0].mxu0 %v355
    %v1726 = vpop.f32.mrb[0].mxu0
    %v1727 = vadd.f32 %v1684, %v1726
    %v1728 = vpop.f32.mrb[0].mxu0
    %v1729 = vadd.f32 %v1686, %v1728
    %v1730 = vpop.f32.mrb[0].mxu0
    %v1731 = vadd.f32 %v1688, %v1730
    %v1732 = vpop.f32.mrb[0].mxu0
    %v1733 = vadd.f32 %v1690, %v1732
    %1734 = vdwg.mxu0
    %1735 = vmatprep.subr.bf16.mxu0 %v1266
    %1736 = vmatpush1.bf16.msra.mxu0 %v1265
    %1737 = vmatprep.subr.bf16.mxu0 %v1270
    %1738 = vmatpush1.bf16.msra.mxu0 %v1269
    %1739 = vmatprep.subr.bf16.mxu0 %v1274
    %1740 = vmatpush1.bf16.msra.mxu0 %v1273
    %1741 = vmatprep.subr.bf16.mxu0 %v1278
    %1742 = vmatpush1.bf16.msra.mxu0 %v1277
    %1743 = vmatprep.subr.bf16.mxu0 %v1282
    %1744 = vmatpush1.bf16.msra.mxu0 %v1281
    %1745 = vmatprep.subr.bf16.mxu0 %v1286
    %1746 = vmatpush1.bf16.msra.mxu0 %v1285
    %1747 = vmatprep.subr.bf16.mxu0 %v1290
    %1748 = vmatpush1.bf16.msra.mxu0 %v1289
    %1749 = vmatprep.subr.bf16.mxu0 %v1294
    %1750 = vmatpush1.bf16.msra.mxu0 %v1293
    %1751 = vmatprep.subr.bf16.mxu0 %v1298
    %1752 = vmatpush1.bf16.msra.mxu0 %v1297
    %1753 = vmatprep.subr.bf16.mxu0 %v1302
    %1754 = vmatpush1.bf16.msra.mxu0 %v1301
    %1755 = vmatprep.subr.bf16.mxu0 %v1306
    %1756 = vmatpush1.bf16.msra.mxu0 %v1305
    %1757 = vmatprep.subr.bf16.mxu0 %v1310
    %1758 = vmatpush1.bf16.msra.mxu0 %v1309
    %1759 = vmatprep.subr.bf16.mxu0 %v1314
    %1760 = vmatpush1.bf16.msra.mxu0 %v1313
    %1761 = vmatprep.subr.bf16.mxu0 %v1318
    %1762 = vmatpush1.bf16.msra.mxu0 %v1317
    %1763 = vmatprep.subr.bf16.mxu0 %v1322
    %1764 = vmatpush1.bf16.msra.mxu0 %v1321
    %1765 = vmatprep.subr.bf16.mxu0 %v1326
    %1766 = vmatpush1.bf16.msra.mxu0 %v1325
    %1767 = vmatprep.mubr.bf16.mxu0 %v358
    %1768 = vmatmul.mubr.bf16.gmra.mrb[0].mxu0 %v357
    %v1769 = vpop.f32.mrb[0].mxu0
    %v1770 = vadd.f32 %v1727, %v1769
    %v1771 = vpop.f32.mrb[0].mxu0
    %v1772 = vadd.f32 %v1729, %v1771
    %v1773 = vpop.f32.mrb[0].mxu0
    %v1774 = vadd.f32 %v1731, %v1773
    %v1775 = vpop.f32.mrb[0].mxu0
    %v1776 = vadd.f32 %v1733, %v1775
    %1777 = vdwg.mxu0
    %1778 = vmatprep.subr.bf16.mxu0 %v1330
    %1779 = vmatpush1.bf16.msra.mxu0 %v1329
    %1780 = vmatprep.subr.bf16.mxu0 %v1334
    %1781 = vmatpush1.bf16.msra.mxu0 %v1333
    %1782 = vmatprep.subr.bf16.mxu0 %v1338
    %1783 = vmatpush1.bf16.msra.mxu0 %v1337
    %1784 = vmatprep.subr.bf16.mxu0 %v1342
    %1785 = vmatpush1.bf16.msra.mxu0 %v1341
    %1786 = vmatprep.subr.bf16.mxu0 %v1346
    %1787 = vmatpush1.bf16.msra.mxu0 %v1345
    %1788 = vmatprep.subr.bf16.mxu0 %v1350
    %1789 = vmatpush1.bf16.msra.mxu0 %v1349
    %1790 = vmatprep.subr.bf16.mxu0 %v1354
    %1791 = vmatpush1.bf16.msra.mxu0 %v1353
    %1792 = vmatprep.subr.bf16.mxu0 %v1358
    %1793 = vmatpush1.bf16.msra.mxu0 %v1357
    %1794 = vmatprep.subr.bf16.mxu0 %v1362
    %1795 = vmatpush1.bf16.msra.mxu0 %v1361
    %1796 = vmatprep.subr.bf16.mxu0 %v1366
    %1797 = vmatpush1.bf16.msra.mxu0 %v1365
    %1798 = vmatprep.subr.bf16.mxu0 %v1370
    %1799 = vmatpush1.bf16.msra.mxu0 %v1369
    %1800 = vmatprep.subr.bf16.mxu0 %v1374
    %1801 = vmatpush1.bf16.msra.mxu0 %v1373
    %1802 = vmatprep.subr.bf16.mxu0 %v1378
    %1803 = vmatpush1.bf16.msra.mxu0 %v1377
    %1804 = vmatprep.subr.bf16.mxu0 %v1382
    %1805 = vmatpush1.bf16.msra.mxu0 %v1381
    %1806 = vmatprep.subr.bf16.mxu0 %v1386
    %1807 = vmatpush1.bf16.msra.mxu0 %v1385
    %1808 = vmatprep.subr.bf16.mxu0 %v1390
    %1809 = vmatpush1.bf16.msra.mxu0 %v1389
    %1810 = vmatprep.mubr.bf16.mxu0 %v360
    %1811 = vmatmul.mubr.bf16.gmra.mrb[0].mxu0 %v359
    %v1812 = vpop.f32.mrb[0].mxu0
    %v1813 = vadd.f32 %v1770, %v1812
    %v1814 = vpop.f32.mrb[0].mxu0
    %v1815 = vadd.f32 %v1772, %v1814
    %v1816 = vpop.f32.mrb[0].mxu0
    %v1817 = vadd.f32 %v1774, %v1816
    %v1818 = vpop.f32.mrb[0].mxu0
    %v1819 = vadd.f32 %v1776, %v1818
    %1820 = vdwg.mxu0
    %1821 = vmatprep.subr.bf16.mxu0 %v1140
    %1822 = vmatpush1.bf16.msra.mxu0 %v1139
    %1823 = vmatprep.subr.bf16.mxu0 %v1144
    %1824 = vmatpush1.bf16.msra.mxu0 %v1143
    %1825 = vmatprep.subr.bf16.mxu0 %v1148
    %1826 = vmatpush1.bf16.msra.mxu0 %v1147
    %1827 = vmatprep.subr.bf16.mxu0 %v1152
    %1828 = vmatpush1.bf16.msra.mxu0 %v1151
    %1829 = vmatprep.subr.bf16.mxu0 %v1156
    %1830 = vmatpush1.bf16.msra.mxu0 %v1155
    %1831 = vmatprep.subr.bf16.mxu0 %v1160
    %1832 = vmatpush1.bf16.msra.mxu0 %v1159
    %1833 = vmatprep.subr.bf16.mxu0 %v1164
    %1834 = vmatpush1.bf16.msra.mxu0 %v1163
    %1835 = vmatprep.subr.bf16.mxu0 %v1168
    %1836 = vmatpush1.bf16.msra.mxu0 %v1167
    %1837 = vmatprep.subr.bf16.mxu0 %v1172
    %1838 = vmatpush1.bf16.msra.mxu0 %v1171
    %1839 = vmatprep.subr.bf16.mxu0 %v1176
    %1840 = vmatpush1.bf16.msra.mxu0 %v1175
    %1841 = vmatprep.subr.bf16.mxu0 %v1180
    %1842 = vmatpush1.bf16.msra.mxu0 %v1179
    %1843 = vmatprep.subr.bf16.mxu0 %v1184
    %1844 = vmatpush1.bf16.msra.mxu0 %v1183
    %1845 = vmatprep.subr.bf16.mxu0 %v1188
    %1846 = vmatpush1.bf16.msra.mxu0 %v1187
    %1847 = vmatprep.subr.bf16.mxu0 %v1192
    %1848 = vmatpush1.bf16.msra.mxu0 %v1191
    %1849 = vmatprep.subr.bf16.mxu0 %v1196
    %1850 = vmatpush1.bf16.msra.mxu0 %v1195
    %1851 = vmatprep.subr.bf16.mxu0 %v1200
    %1852 = vmatpush1.bf16.msra.mxu0 %v1199
    %1853 = vmatprep.mubr.bf16.mxu0 %v354
    %1854 = vmatmul.mubr.bf16.gmra.mrb[0].mxu0 %v353
    %v1855 = vpop.f32.mrb[0].mxu0
    %v1856 = vadd.f32 %v320, %v1855
    %v1857 = vpop.f32.mrb[0].mxu0
    %v1858 = vadd.f32 %v324, %v1857
    %v1859 = vpop.f32.mrb[0].mxu0
    %v1860 = vadd.f32 %v320, %v1859
    %v1861 = vpop.f32.mrb[0].mxu0
    %v1862 = vadd.f32 %v324, %v1861
    %1863 = vdwg.mxu0
    %1864 = vmatprep.subr.bf16.mxu0 %v1204
    %1865 = vmatpush1.bf16.msra.mxu0 %v1203
    %1866 = vmatprep.subr.bf16.mxu0 %v1208
    %1867 = vmatpush1.bf16.msra.mxu0 %v1207
    %1868 = vmatprep.subr.bf16.mxu0 %v1212
    %1869 = vmatpush1.bf16.msra.mxu0 %v1211
    %1870 = vmatprep.subr.bf16.mxu0 %v1216
    %1871 = vmatpush1.bf16.msra.mxu0 %v1215
    %1872 = vmatprep.subr.bf16.mxu0 %v1220
    %1873 = vmatpush1.bf16.msra.mxu0 %v1219
    %1874 = vmatprep.subr.bf16.mxu0 %v1224
    %1875 = vmatpush1.bf16.msra.mxu0 %v1223
    %1876 = vmatprep.subr.bf16.mxu0 %v1228
    %1877 = vmatpush1.bf16.msra.mxu0 %v1227
    %1878 = vmatprep.subr.bf16.mxu0 %v1232
    %1879 = vmatpush1.bf16.msra.mxu0 %v1231
    %1880 = vmatprep.subr.bf16.mxu0 %v1236
    %1881 = vmatpush1.bf16.msra.mxu0 %v1235
    %1882 = vmatprep.subr.bf16.mxu0 %v1240
    %1883 = vmatpush1.bf16.msra.mxu0 %v1239
    %1884 = vmatprep.subr.bf16.mxu0 %v1244
    %1885 = vmatpush1.bf16.msra.mxu0 %v1243
    %1886 = vmatprep.subr.bf16.mxu0 %v1248
    %1887 = vmatpush1.bf16.msra.mxu0 %v1247
    %1888 = vmatprep.subr.bf16.mxu0 %v1252
    %1889 = vmatpush1.bf16.msra.mxu0 %v1251
    %1890 = vmatprep.subr.bf16.mxu0 %v1256
    %1891 = vmatpush1.bf16.msra.mxu0 %v1255
    %1892 = vmatprep.subr.bf16.mxu0 %v1260
    %1893 = vmatpush1.bf16.msra.mxu0 %v1259
    %1894 = vmatprep.subr.bf16.mxu0 %v1264
    %1895 = vmatpush1.bf16.msra.mxu0 %v1263
    %1896 = vmatprep.mubr.bf16.mxu0 %v356
    %1897 = vmatmul.mubr.bf16.gmra.mrb[0].mxu0 %v355
    %v1898 = vpop.f32.mrb[0].mxu0
    %v1899 = vadd.f32 %v1856, %v1898
    %v1900 = vpop.f32.mrb[0].mxu0
    %v1901 = vadd.f32 %v1858, %v1900
    %v1902 = vpop.f32.mrb[0].mxu0
    %v1903 = vadd.f32 %v1860, %v1902
    %v1904 = vpop.f32.mrb[0].mxu0
    %v1905 = vadd.f32 %v1862, %v1904
    %1906 = vdwg.mxu0
    %1907 = vmatprep.subr.bf16.mxu0 %v1268
    %1908 = vmatpush1.bf16.msra.mxu0 %v1267
    %1909 = vmatprep.subr.bf16.mxu0 %v1272
    %1910 = vmatpush1.bf16.msra.mxu0 %v1271
    %1911 = vmatprep.subr.bf16.mxu0 %v1276
    %1912 = vmatpush1.bf16.msra.mxu0 %v1275
    %1913 = vmatprep.subr.bf16.mxu0 %v1280
    %1914 = vmatpush1.bf16.msra.mxu0 %v1279
    %1915 = vmatprep.subr.bf16.mxu0 %v1284
    %1916 = vmatpush1.bf16.msra.mxu0 %v1283
    %1917 = vmatprep.subr.bf16.mxu0 %v1288
    %1918 = vmatpush1.bf16.msra.mxu0 %v1287
    %1919 = vmatprep.subr.bf16.mxu0 %v1292
    %1920 = vmatpush1.bf16.msra.mxu0 %v1291
    %1921 = vmatprep.subr.bf16.mxu0 %v1296
    %1922 = vmatpush1.bf16.msra.mxu0 %v1295
    %1923 = vmatprep.subr.bf16.mxu0 %v1300
    %1924 = vmatpush1.bf16.msra.mxu0 %v1299
    %1925 = vmatprep.subr.bf16.mxu0 %v1304
    %1926 = vmatpush1.bf16.msra.mxu0 %v1303
    %1927 = vmatprep.subr.bf16.mxu0 %v1308
    %1928 = vmatpush1.bf16.msra.mxu0 %v1307
    %1929 = vmatprep.subr.bf16.mxu0 %v1312
    %1930 = vmatpush1.bf16.msra.mxu0 %v1311
    %1931 = vmatprep.subr.bf16.mxu0 %v1316
    %1932 = vmatpush1.bf16.msra.mxu0 %v1315
    %1933 = vmatprep.subr.bf16.mxu0 %v1320
    %1934 = vmatpush1.bf16.msra.mxu0 %v1319
    %1935 = vmatprep.subr.bf16.mxu0 %v1324
    %1936 = vmatpush1.bf16.msra.mxu0 %v1323
    %1937 = vmatprep.subr.bf16.mxu0 %v1328
    %1938 = vmatpush1.bf16.msra.mxu0 %v1327
    %1939 = vmatprep.mubr.bf16.mxu0 %v358
    %1940 = vmatmul.mubr.bf16.gmra.mrb[0].mxu0 %v357
    %v1941 = vpop.f32.mrb[0].mxu0
    %v1942 = vadd.f32 %v1899, %v1941
    %v1943 = vpop.f32.mrb[0].mxu0
    %v1944 = vadd.f32 %v1901, %v1943
    %v1945 = vpop.f32.mrb[0].mxu0
    %v1946 = vadd.f32 %v1903, %v1945
    %v1947 = vpop.f32.mrb[0].mxu0
    %v1948 = vadd.f32 %v1905, %v1947
    %1949 = vdwg.mxu0
    %1950 = vmatprep.subr.bf16.mxu0 %v1332
    %1951 = vmatpush1.bf16.msra.mxu0 %v1331
    %1952 = vmatprep.subr.bf16.mxu0 %v1336
    %1953 = vmatpush1.bf16.msra.mxu0 %v1335
    %1954 = vmatprep.subr.bf16.mxu0 %v1340
    %1955 = vmatpush1.bf16.msra.mxu0 %v1339
    %1956 = vmatprep.subr.bf16.mxu0 %v1344
    %1957 = vmatpush1.bf16.msra.mxu0 %v1343
    %1958 = vmatprep.subr.bf16.mxu0 %v1348
    %1959 = vmatpush1.bf16.msra.mxu0 %v1347
    %1960 = vmatprep.subr.bf16.mxu0 %v1352
    %1961 = vmatpush1.bf16.msra.mxu0 %v1351
    %1962 = vmatprep.subr.bf16.mxu0 %v1356
    %1963 = vmatpush1.bf16.msra.mxu0 %v1355
    %1964 = vmatprep.subr.bf16.mxu0 %v1360
    %1965 = vmatpush1.bf16.msra.mxu0 %v1359
    %1966 = vmatprep.subr.bf16.mxu0 %v1364
    %1967 = vmatpush1.bf16.msra.mxu0 %v1363
    %1968 = vmatprep.subr.bf16.mxu0 %v1368
    %1969 = vmatpush1.bf16.msra.mxu0 %v1367
    %1970 = vmatprep.subr.bf16.mxu0 %v1372
    %1971 = vmatpush1.bf16.msra.mxu0 %v1371
    %1972 = vmatprep.subr.bf16.mxu0 %v1376
    %1973 = vmatpush1.bf16.msra.mxu0 %v1375
    %1974 = vmatprep.subr.bf16.mxu0 %v1380
    %1975 = vmatpush1.bf16.msra.mxu0 %v1379
    %1976 = vmatprep.subr.bf16.mxu0 %v1384
    %1977 = vmatpush1.bf16.msra.mxu0 %v1383
    %1978 = vmatprep.subr.bf16.mxu0 %v1388
    %1979 = vmatpush1.bf16.msra.mxu0 %v1387
    %1980 = vmatprep.subr.bf16.mxu0 %v1392
    %1981 = vmatpush1.bf16.msra.mxu0 %v1391
    %1982 = vmatprep.mubr.bf16.mxu0 %v360
    %1983 = vmatmul.mubr.bf16.gmra.mrb[0].mxu0 %v359
    %v1984 = vpop.f32.mrb[0].mxu0
    %v1985 = vadd.f32 %v1942, %v1984
    %v1986 = vpop.f32.mrb[0].mxu0
    %v1987 = vadd.f32 %v1944, %v1986
    %v1988 = vpop.f32.mrb[0].mxu0
    %v1989 = vadd.f32 %v1946, %v1988
    %v1990 = vpop.f32.mrb[0].mxu0
    %v1991 = vadd.f32 %v1948, %v1990
    %1992 = vdwg.mxu0
    %1993 = vst [vmem:[#allocation7] sm:$0xff] %v1813
    %1994 = vst [vmem:[#allocation7 + $0x8] sm:$0xff] %v1815
    %1995 = vst [vmem:[#allocation7 + $0x10] sm:$0xff] %v1985
    %1996 = vst [vmem:[#allocation7 + $0x18] sm:$0xff] %v1987
    %1997 = vst [vmem:[#allocation7 + $0x20] sm:$0xff] %v1817
    %1998 = vst [vmem:[#allocation7 + $0x28] sm:$0xff] %v1819
    %1999 = vst [vmem:[#allocation7 + $0x30] sm:$0xff] %v1989
    %2000 = vst [vmem:[#allocation7 + $0x38] sm:$0xff] %v1991
    // Predicated region
    $region22: #{tpu_custom_call.1} parent=1 // pred_check
      _
    $region23: #{tpu_custom_call.1} parent=1 // pred_check_branch
      %2002 = sbr.rel (0) target = $region25
    $region24: #{tpu_custom_call.1} parent=1 // pred_region
      %s2004 = ssub.s32 1024, 1024
      %2005 = vsyncadd [#allocation4], %s2004
      %s2006 = sshll.u32 [#allocation7], 4
      %s2007 = int_to_ptr.vmem [resolvable:$true] %s2006
      %2012 = dma.vmem_to_hbm [thread:$0]  %s2007, 1024, %s3, [#allocation4], 512, 512, 32
    $region25: #{tpu_custom_call.1} parent=1 // pred_fallthru
      _
    // Predicated region
    $region26: #{tpu_custom_call.1} parent=1 // pred_check
      _
    $region27: #{tpu_custom_call.1} parent=1 // pred_check_branch
      %2014 = sbr.rel (0) target = $region29
    $region28: #{tpu_custom_call.1} parent=1 // pred_region
      %2015 = dma.done [#allocation4], 1024
    $region29: #{tpu_custom_call.1} parent=1 // pred_fallthru
      _
    %2016 = vsyncpa [#allocation3], 1
    %2017 = vsyncpa [#allocation6], 1
    %2018 = vsyncpa [#allocation4], 1

</llo_original>
